<compile_context>
chip_gen: v6e
topology: v6e:2x2x1
jax: 0.10.0
libtpu: 0.0.40
codegen_flags: <defaults>
</compile_context>

<pallas_src>
import functools

import jax
import jax.numpy as jnp
from jax import lax
from jax.experimental import pallas as pl
from jax.experimental.pallas import tpu as pltpu


# ---------------------------------------------------------------------------
# Kernel
# ---------------------------------------------------------------------------
def _attention_block_kernel(q_ref, k_ref, v_ref,
                            wq_ref, bq_ref,
                            wk_ref, bk_ref,
                            wv_ref, bv_ref,
                            wfc_ref, bfc_ref,
                            sel_ref,
                            o_ref, *, head_dim):
    # q/k/v_ref : [TB, Ep]      lane-packed batch tile (Ep = pack * hid_dim)
    # w*_ref    : [Ep, Ep]      block-diagonal weights, PyTorch (out, in) layout
    # b*_ref    : [1, Ep]       tiled biases (f32)
    # sel_ref   : [Ep, D*Ep]    exact 0/1 selection matrix (concat over key slot j)
    # o_ref     : [TB, Ep]
    d = head_dim
    ep = q_ref.shape[1]
    inv_scale = 1.0 / (float(d) ** 0.5)

    # x @ W^T without materializing W^T: contract the `in` dim of both.
    xwt = (((1,), (1,)), ((), ()))

    wdt = wq_ref.dtype                       # f32 or bf16 MXU operands
    q_in = q_ref[...].astype(wdt)
    k_in = k_ref[...].astype(wdt)
    v_in = v_ref[...].astype(wdt)

    q = lax.dot_general(q_in, wq_ref[...], xwt,
                        preferred_element_type=jnp.float32) + bq_ref[...]
    k = lax.dot_general(k_in, wk_ref[...], xwt,
                        preferred_element_type=jnp.float32) + bk_ref[...]
    v = lax.dot_general(v_in, wv_ref[...], xwt,
                        preferred_element_type=jnp.float32) + bv_ref[...]

    # Fused key/value "broadcast-per-head-slot":
    #   k_all[:, j*Ep + f] == K[:, head(f)*D + j]   (exact 0/1 selection matmul)
    sel = sel_ref[...]
    k_all = jnp.dot(k.astype(sel.dtype), sel, preferred_element_type=jnp.float32)
    v_all = jnp.dot(v.astype(sel.dtype), sel, preferred_element_type=jnp.float32)

    # Two-pass softmax over the D key slots of each head (D small -> unrolled;
    # slices below are static lane slices of a value, zero cost).
    qs = q * inv_scale
    t = [qs * k_all[:, j * ep:(j + 1) * ep] for j in range(d)]

    m = t[0]
    for j in range(1, d):
        m = jnp.maximum(m, t[j])

    l = jnp.zeros_like(m)
    acc = jnp.zeros_like(m)
    for j in range(d):
        p = jnp.exp(t[j] - m)
        l = l + p
        acc = acc + p * v_all[:, j * ep:(j + 1) * ep]

    ctx = acc * pl.reciprocal(l, approx=False)   # [TB, Ep]

    # fc: PyTorch's permute(0,2,1,3).view() is pre-folded into wfc (wrapper).
    out = lax.dot_general(ctx.astype(wdt), wfc_ref[...], xwt,
                          preferred_element_type=jnp.float32) + bfc_ref[...]
    o_ref[...] = out.astype(o_ref.dtype)


# ---------------------------------------------------------------------------
# One-time parameter preparation (do this at parameter-load time)
# ---------------------------------------------------------------------------
def prepare_attention_params(w_q, b_q, w_k, b_k, w_v, b_v, w_fc, b_fc,
                             *, n_heads, pack=None,
                             matmul_dtype=jnp.float32):
    """Builds lane-packed, block-diagonal parameters + the selection matrix."""
    E = w_q.shape[0]
    assert E % n_heads == 0
    D = E // n_heads

    # Lane-packing factor: pack P batch rows so the feature axis is lane-dense.
    if pack is None:
        pack = 128 // E if (E < 128 and 128 % E == 0) else 1
    Ep = pack * E

    # Fold the output head permutation (permute(0,2,1,3).view) into fc:
    # kernel ctx uses feature g = h*D + i; PyTorch's fc consumes i*H + h.
    g = jnp.arange(E)
    perm = (g % D) * n_heads + g // D
    w_fc_p = w_fc[:, perm]

    eye_p = jnp.eye(pack, dtype=jnp.float32)

    def blk(w):   # block-diagonal weight for lane-packed rows
        return jnp.kron(eye_p, w.astype(jnp.float32)).astype(matmul_dtype)

    def tile_b(b):
        return jnp.tile(b.astype(jnp.float32).reshape(1, E), (1, pack))

    # sel_all[a, j*Ep + f] = 1 iff a == (f // D) * D + j  (integer arithmetic,
    # exact for any head_dim).  (x @ sel_all)[:, j*Ep + f] == x[:, head(f)*D + j].
    a = jnp.arange(Ep)[:, None]
    f = jnp.arange(Ep)[None, :]
    head_base = (f // D) * D
    sel_all = jnp.concatenate(
        [(a == head_base + j).astype(matmul_dtype) for j in range(D)], axis=1)

    return dict(
        hid_dim=E, n_heads=n_heads, head_dim=D, pack=pack, ep=Ep,
        w_q=blk(w_q), w_k=blk(w_k), w_v=blk(w_v), w_fc=blk(w_fc_p),
        b_q=tile_b(b_q), b_k=tile_b(b_k), b_v=tile_b(b_v), b_fc=tile_b(b_fc),
        sel_all=sel_all,
    )


# ---------------------------------------------------------------------------
# Grid / tile selection
# ---------------------------------------------------------------------------
def _num_tensorcores():
    """Heuristic TensorCores-per-device count (only affects tile choice)."""
    try:
        kind = jax.devices()[0].device_kind.lower()
    except Exception:
        return 1
    # dual-TC devices: v4 / v5p megacore, v7x.  Single-TC: v5e, v6e.
    if ("v4" in kind) or ("v5p" in kind) or ("v5 p" in kind) or ("7" in kind):
        return 2
    return 1


def _choose_tb(bp, block_rows, num_cores):
    """Pick the packed-batch tile size (rows of the [Bp, Ep] packed inputs)."""
    if bp <= 8 or bp % 8 != 0:
        return bp                                 # single full block
    cands = [t for t in range(8, min(block_rows, bp) + 1, 8) if bp % t == 0]
    if not cands:
        return bp
    if num_cores > 1:
        good = [t for t in cands if bp // t >= num_cores]
        if good:                                  # keep >= num_cores parallel steps
            return max(good)
    return max(cands)                             # single-TC: biggest tile that fits


# ---------------------------------------------------------------------------
# Forward application
# ---------------------------------------------------------------------------
def attention_block_apply(params, query, key, value,
                          *, block_rows=2048, num_cores=None):
    """Apply the prepared AttentionBlock to [B, hid_dim] q/k/v.  Returns [B, hid_dim] f32."""
    B, E = query.shape
    assert E == params["hid_dim"]
    P = params["pack"]
    Ep = params["ep"]
    D = params["head_dim"]

    # Pad batch to a multiple of the packing factor (rare; sliced off at the end).
    pad = (-B) % P
    if pad:
        z = jnp.zeros((pad, E), query.dtype)
        query = jnp.concatenate([query, z], axis=0)
        key = jnp.concatenate([key, z], axis=0)
        value = jnp.concatenate([value, z], axis=0)
    Bt = B + pad
    Bp = Bt // P

    # Row-major view: packed row r = original rows r*P .. r*P+P-1 concatenated.
    qp = query.reshape(Bp, Ep)
    kp = key.reshape(Bp, Ep)
    vp = value.reshape(Bp, Ep)

    nc = _num_tensorcores() if num_cores is None else num_cores
    tb = _choose_tb(Bp, block_rows, nc)
    grid = (pl.cdiv(Bp, tb),)

    row_spec = pl.BlockSpec((tb, Ep), lambda i: (i, 0))
    w_spec = pl.BlockSpec((Ep, Ep), lambda i: (0, 0))        # VMEM-resident weights
    b_spec = pl.BlockSpec((1, Ep), lambda i: (0, 0))
    sel_spec = pl.BlockSpec((Ep, D * Ep), lambda i: (0, 0))

    w_bytes = jnp.dtype(params["w_q"].dtype).itemsize
    cost = pl.CostEstimate(
        flops=2 * Bp * Ep * Ep * 4 + 2 * 2 * Bp * Ep * (D * Ep),
        transcendentals=Bp * Ep * (D + 1),
        bytes_accessed=(4 * 4 * Bp * Ep
                        + w_bytes * (4 * Ep * Ep + Ep * D * Ep)
                        + 4 * 4 * Ep),
    )

    kernel = functools.partial(_attention_block_kernel, head_dim=D)

    out = pl.pallas_call(
        kernel,
        out_shape=jax.ShapeDtypeStruct((Bp, Ep), jnp.float32),
        grid_spec=pltpu.PrefetchScalarGridSpec(
            num_scalar_prefetch=0,
            grid=grid,
            in_specs=[row_spec, row_spec, row_spec,
                      w_spec, b_spec, w_spec, b_spec, w_spec, b_spec,
                      w_spec, b_spec, sel_spec],
            out_specs=row_spec,
        ),
        compiler_params=pltpu.CompilerParams(
            dimension_semantics=("parallel",),   # batch tiles are independent
        ),
        cost_estimate=cost,
    )(qp, kp, vp,
      params["w_q"], params["b_q"], params["w_k"], params["b_k"],
      params["w_v"], params["b_v"], params["w_fc"], params["b_fc"],
      params["sel_all"])

    out = out.reshape(Bt, E)
    return out[:B] if pad else out


def attention_block_forward(query, key, value,
                            w_q, b_q, w_k, b_k, w_v, b_v, w_fc, b_fc,
                            *, n_heads, matmul_dtype=jnp.float32):
    """Convenience one-shot wrapper (prep + apply).  Prefer prepare+apply in a loop."""
    params = prepare_attention_params(w_q, b_q, w_k, b_k, w_v, b_v, w_fc, b_fc,
                                      n_heads=n_heads, matmul_dtype=matmul_dtype)
    return attention_block_apply(params, query, key, value)


# ---------------------------------------------------------------------------
# Reference (straight jnp transcription of the PyTorch module, eval mode)
# ---------------------------------------------------------------------------
def _reference_forward(query, key, value,
                       w_q, b_q, w_k, b_k, w_v, b_v, w_fc, b_fc, *, n_heads):
    B, E = query.shape
    D = E // n_heads
    hi = "highest"
    Q = jnp.dot(query, w_q.T, precision=hi) + b_q
    K = jnp.dot(key, w_k.T, precision=hi) + b_k
    V = jnp.dot(value, w_v.T, precision=hi) + b_v
    Qh = Q.reshape(B, n_heads, D)[..., None]                       # [B, H, D, 1]
    Kt = K.reshape(B, n_heads, D)[..., None].swapaxes(2, 3)        # [B, H, 1, D]
    Vh = V.reshape(B, n_heads, D)[..., None]                       # [B, H, D, 1]
    energy = jnp.matmul(Qh, Kt, precision=hi) / jnp.sqrt(jnp.float32(D))
    attn = jax.nn.softmax(energy, axis=-1)                         # [B, H, D, D]
    wm = jnp.matmul(attn, Vh, precision=hi)                        # [B, H, D, 1]
    wm = jnp.transpose(wm, (0, 2, 1, 3)).reshape(B, E)             # permute+view
    return jnp.dot(wm, w_fc.T, precision=hi) + b_fc


if __name__ == "__main__":
    # Small shapes consistent with the module: vectors of hid_dim per row.
    B, hid_dim, n_heads = 128, 32, 4     # head_dim = 8; pack = 4 -> 128 lanes

    prng = jax.random.PRNGKey(0)
    keys = jax.random.split(prng, 11)
    query = jax.random.normal(keys[0], (B, hid_dim), jnp.float32)
    key_in = jax.random.normal(keys[1], (B, hid_dim), jnp.float32)
    value = jax.random.normal(keys[2], (B, hid_dim), jnp.float32)

    def _linear_params(kw, kb):
        w = jax.random.normal(kw, (hid_dim, hid_dim), jnp.float32) * 0.1
        b = jax.random.normal(kb, (hid_dim,), jnp.float32) * 0.1
        return w, b

    w_q, b_q = _linear_params(keys[3], keys[4])
    w_k, b_k = _linear_params(keys[5], keys[6])
    w_v, b_v = _linear_params(keys[7], keys[8])
    w_fc, b_fc = _linear_params(keys[9], keys[10])

    ref = _reference_forward(query, key_in, value,
                             w_q, b_q, w_k, b_k, w_v, b_v, w_fc, b_fc,
                             n_heads=n_heads)

    # --- f32 MXU-operand path (parity check vs reference) --------------------
    params_f32 = prepare_attention_params(
        w_q, b_q, w_k, b_k, w_v, b_v, w_fc, b_fc,
        n_heads=n_heads, matmul_dtype=jnp.float32)
    out = jax.block_until_ready(
        attention_block_apply(params_f32, query, key_in, value))
    assert out.shape == (B, hid_dim)
    assert jnp.allclose(out, ref, atol=2e-4, rtol=2e-4), "f32 path mismatch"

    # --- bf16 MXU-operand path (perf option; relaxed tolerance) ---------------
    params_bf16 = prepare_attention_params(
        w_q, b_q, w_k, b_k, w_v, b_v, w_fc, b_fc,
        n_heads=n_heads, matmul_dtype=jnp.bfloat16)
    out_bf = jax.block_until_ready(
        attention_block_apply(params_bf16, query, key_in, value))
    err = float(jnp.max(jnp.abs(out_bf - ref)))
    scale = max(1.0, float(jnp.max(jnp.abs(ref))))
    assert err <= 0.05 * scale, f"bf16 path too far from reference: {err}"

    print("KERNEL_OK")
</pallas_src>

<mosaic_0001>
module attributes {stable_mosaic.version = 11 : i64} {
  func.func @_attention_block_kernel(%arg0: i32, %arg1: memref<32x128xf32, #tpu.memory_space<vmem>>, %arg2: memref<32x128xf32, #tpu.memory_space<vmem>>, %arg3: memref<32x128xf32, #tpu.memory_space<vmem>>, %arg4: memref<128x128xf32, #tpu.memory_space<vmem>>, %arg5: memref<1x128xf32, #tpu.memory_space<vmem>>, %arg6: memref<128x128xf32, #tpu.memory_space<vmem>>, %arg7: memref<1x128xf32, #tpu.memory_space<vmem>>, %arg8: memref<128x128xf32, #tpu.memory_space<vmem>>, %arg9: memref<1x128xf32, #tpu.memory_space<vmem>>, %arg10: memref<128x128xf32, #tpu.memory_space<vmem>>, %arg11: memref<1x128xf32, #tpu.memory_space<vmem>>, %arg12: memref<128x1024xf32, #tpu.memory_space<vmem>>, %arg13: memref<32x128xf32, #tpu.memory_space<vmem>>) attributes {dimension_semantics = [#tpu.dimension_semantics<parallel>], iteration_bounds = array<i64: 1>, scalar_prefetch = 0 : i64, scratch_operands = 0 : i64, tpu.core_type = #tpu.core_type<tc>, window_params = [{transform_indices = @transform_0, window_bounds = array<i64: 32, 128>}, {transform_indices = @transform_1, window_bounds = array<i64: 32, 128>}, {transform_indices = @transform_2, window_bounds = array<i64: 32, 128>}, {pipeline_mode = #tpu.pipeline_mode<synchronous>, transform_indices = @transform_3, window_bounds = array<i64: 128, 128>}, {pipeline_mode = #tpu.pipeline_mode<synchronous>, transform_indices = @transform_4, window_bounds = array<i64: 1, 128>}, {pipeline_mode = #tpu.pipeline_mode<synchronous>, transform_indices = @transform_5, window_bounds = array<i64: 128, 128>}, {pipeline_mode = #tpu.pipeline_mode<synchronous>, transform_indices = @transform_6, window_bounds = array<i64: 1, 128>}, {pipeline_mode = #tpu.pipeline_mode<synchronous>, transform_indices = @transform_7, window_bounds = array<i64: 128, 128>}, {pipeline_mode = #tpu.pipeline_mode<synchronous>, transform_indices = @transform_8, window_bounds = array<i64: 1, 128>}, {pipeline_mode = #tpu.pipeline_mode<synchronous>, transform_indices = @transform_9, window_bounds = array<i64: 128, 128>}, {pipeline_mode = #tpu.pipeline_mode<synchronous>, transform_indices = @transform_10, window_bounds = array<i64: 1, 128>}, {pipeline_mode = #tpu.pipeline_mode<synchronous>, transform_indices = @transform_11, window_bounds = array<i64: 128, 1024>}, {transform_indices = @transform_12, window_bounds = array<i64: 32, 128>}]} {
    %c0 = arith.constant 0 : index
    %c0_0 = arith.constant 0 : index
    %0 = vector.load %arg1[%c0, %c0_0] : memref<32x128xf32, #tpu.memory_space<vmem>>, vector<32x128xf32>
    %c0_1 = arith.constant 0 : index
    %c0_2 = arith.constant 0 : index
    %1 = vector.load %arg2[%c0_1, %c0_2] : memref<32x128xf32, #tpu.memory_space<vmem>>, vector<32x128xf32>
    %c0_3 = arith.constant 0 : index
    %c0_4 = arith.constant 0 : index
    %2 = vector.load %arg3[%c0_3, %c0_4] : memref<32x128xf32, #tpu.memory_space<vmem>>, vector<32x128xf32>
    %c0_5 = arith.constant 0 : index
    %c0_6 = arith.constant 0 : index
    %3 = vector.load %arg4[%c0_5, %c0_6] : memref<128x128xf32, #tpu.memory_space<vmem>>, vector<128x128xf32>
    %cst = arith.constant dense<0.000000e+00> : vector<32x128xf32>
    %4 = tpu.matmul %0, %3, %cst {dimension_numbers = #tpu.dot_dimension_numbers<[1], [1], [0], [0], [0, 0, 1, 0], [], []>} : vector<32x128xf32>, vector<128x128xf32>, vector<32x128xf32> -> vector<32x128xf32>
    %c0_7 = arith.constant 0 : index
    %c0_8 = arith.constant 0 : index
    %5 = vector.load %arg5[%c0_7, %c0_8] : memref<1x128xf32, #tpu.memory_space<vmem>>, vector<1x128xf32>
    %6 = vector.broadcast %5 : vector<1x128xf32> to vector<32x128xf32>
    %7 = arith.addf %4, %6 : vector<32x128xf32>
    %c0_9 = arith.constant 0 : index
    %c0_10 = arith.constant 0 : index
    %8 = vector.load %arg6[%c0_9, %c0_10] : memref<128x128xf32, #tpu.memory_space<vmem>>, vector<128x128xf32>
    %cst_11 = arith.constant dense<0.000000e+00> : vector<32x128xf32>
    %9 = tpu.matmul %1, %8, %cst_11 {dimension_numbers = #tpu.dot_dimension_numbers<[1], [1], [0], [0], [0, 0, 1, 0], [], []>} : vector<32x128xf32>, vector<128x128xf32>, vector<32x128xf32> -> vector<32x128xf32>
    %c0_12 = arith.constant 0 : index
    %c0_13 = arith.constant 0 : index
    %10 = vector.load %arg7[%c0_12, %c0_13] : memref<1x128xf32, #tpu.memory_space<vmem>>, vector<1x128xf32>
    %11 = vector.broadcast %10 : vector<1x128xf32> to vector<32x128xf32>
    %12 = arith.addf %9, %11 : vector<32x128xf32>
    %c0_14 = arith.constant 0 : index
    %c0_15 = arith.constant 0 : index
    %13 = vector.load %arg8[%c0_14, %c0_15] : memref<128x128xf32, #tpu.memory_space<vmem>>, vector<128x128xf32>
    %cst_16 = arith.constant dense<0.000000e+00> : vector<32x128xf32>
    %14 = tpu.matmul %2, %13, %cst_16 {dimension_numbers = #tpu.dot_dimension_numbers<[1], [1], [0], [0], [0, 0, 1, 0], [], []>} : vector<32x128xf32>, vector<128x128xf32>, vector<32x128xf32> -> vector<32x128xf32>
    %c0_17 = arith.constant 0 : index
    %c0_18 = arith.constant 0 : index
    %15 = vector.load %arg9[%c0_17, %c0_18] : memref<1x128xf32, #tpu.memory_space<vmem>>, vector<1x128xf32>
    %16 = vector.broadcast %15 : vector<1x128xf32> to vector<32x128xf32>
    %17 = arith.addf %14, %16 : vector<32x128xf32>
    %c0_19 = arith.constant 0 : index
    %c0_20 = arith.constant 0 : index
    %18 = vector.load %arg12[%c0_19, %c0_20] : memref<128x1024xf32, #tpu.memory_space<vmem>>, vector<128x1024xf32>
    %cst_21 = arith.constant dense<0.000000e+00> : vector<32x1024xf32>
    %19 = tpu.matmul %12, %18, %cst_21 {dimension_numbers = #tpu.dot_dimension_numbers<[1], [0], [0], [1], [0, 0, 1, 1], [], []>} : vector<32x128xf32>, vector<128x1024xf32>, vector<32x1024xf32> -> vector<32x1024xf32>
    %cst_22 = arith.constant dense<0.000000e+00> : vector<32x1024xf32>
    %20 = tpu.matmul %17, %18, %cst_22 {dimension_numbers = #tpu.dot_dimension_numbers<[1], [0], [0], [1], [0, 0, 1, 1], [], []>} : vector<32x128xf32>, vector<128x1024xf32>, vector<32x1024xf32> -> vector<32x1024xf32>
    %cst_23 = arith.constant 0.353553385 : f32
    %21 = vector.broadcast %cst_23 : f32 to vector<32x128xf32>
    %22 = arith.mulf %7, %21 : vector<32x128xf32>
    %23 = vector.extract_strided_slice %19 {offsets = [0, 0], sizes = [32, 128], strides = [1, 1]} : vector<32x1024xf32> to vector<32x128xf32>
    %24 = arith.mulf %22, %23 : vector<32x128xf32>
    %25 = vector.extract_strided_slice %19 {offsets = [0, 128], sizes = [32, 128], strides = [1, 1]} : vector<32x1024xf32> to vector<32x128xf32>
    %26 = arith.mulf %22, %25 : vector<32x128xf32>
    %27 = vector.extract_strided_slice %19 {offsets = [0, 256], sizes = [32, 128], strides = [1, 1]} : vector<32x1024xf32> to vector<32x128xf32>
    %28 = arith.mulf %22, %27 : vector<32x128xf32>
    %29 = vector.extract_strided_slice %19 {offsets = [0, 384], sizes = [32, 128], strides = [1, 1]} : vector<32x1024xf32> to vector<32x128xf32>
    %30 = arith.mulf %22, %29 : vector<32x128xf32>
    %31 = vector.extract_strided_slice %19 {offsets = [0, 512], sizes = [32, 128], strides = [1, 1]} : vector<32x1024xf32> to vector<32x128xf32>
    %32 = arith.mulf %22, %31 : vector<32x128xf32>
    %33 = vector.extract_strided_slice %19 {offsets = [0, 640], sizes = [32, 128], strides = [1, 1]} : vector<32x1024xf32> to vector<32x128xf32>
    %34 = arith.mulf %22, %33 : vector<32x128xf32>
    %35 = vector.extract_strided_slice %19 {offsets = [0, 768], sizes = [32, 128], strides = [1, 1]} : vector<32x1024xf32> to vector<32x128xf32>
    %36 = arith.mulf %22, %35 : vector<32x128xf32>
    %37 = vector.extract_strided_slice %19 {offsets = [0, 896], sizes = [32, 128], strides = [1, 1]} : vector<32x1024xf32> to vector<32x128xf32>
    %38 = arith.mulf %22, %37 : vector<32x128xf32>
    %39 = arith.maximumf %24, %26 : vector<32x128xf32>
    %40 = arith.maximumf %39, %28 : vector<32x128xf32>
    %41 = arith.maximumf %40, %30 : vector<32x128xf32>
    %42 = arith.maximumf %41, %32 : vector<32x128xf32>
    %43 = arith.maximumf %42, %34 : vector<32x128xf32>
    %44 = arith.maximumf %43, %36 : vector<32x128xf32>
    %45 = arith.maximumf %44, %38 : vector<32x128xf32>
    %cst_24 = arith.constant 0.000000e+00 : f32
    %46 = vector.broadcast %cst_24 : f32 to vector<32x128xf32>
    %cst_25 = arith.constant 0.000000e+00 : f32
    %47 = vector.broadcast %cst_25 : f32 to vector<32x128xf32>
    %48 = arith.subf %24, %45 : vector<32x128xf32>
    %49 = math.exp %48 : vector<32x128xf32>
    %50 = arith.addf %46, %49 : vector<32x128xf32>
    %51 = vector.extract_strided_slice %20 {offsets = [0, 0], sizes = [32, 128], strides = [1, 1]} : vector<32x1024xf32> to vector<32x128xf32>
    %52 = arith.mulf %49, %51 : vector<32x128xf32>
    %53 = arith.addf %47, %52 : vector<32x128xf32>
    %54 = arith.subf %26, %45 : vector<32x128xf32>
    %55 = math.exp %54 : vector<32x128xf32>
    %56 = arith.addf %50, %55 : vector<32x128xf32>
    %57 = vector.extract_strided_slice %20 {offsets = [0, 128], sizes = [32, 128], strides = [1, 1]} : vector<32x1024xf32> to vector<32x128xf32>
    %58 = arith.mulf %55, %57 : vector<32x128xf32>
    %59 = arith.addf %53, %58 : vector<32x128xf32>
    %60 = arith.subf %28, %45 : vector<32x128xf32>
    %61 = math.exp %60 : vector<32x128xf32>
    %62 = arith.addf %56, %61 : vector<32x128xf32>
    %63 = vector.extract_strided_slice %20 {offsets = [0, 256], sizes = [32, 128], strides = [1, 1]} : vector<32x1024xf32> to vector<32x128xf32>
    %64 = arith.mulf %61, %63 : vector<32x128xf32>
    %65 = arith.addf %59, %64 : vector<32x128xf32>
    %66 = arith.subf %30, %45 : vector<32x128xf32>
    %67 = math.exp %66 : vector<32x128xf32>
    %68 = arith.addf %62, %67 : vector<32x128xf32>
    %69 = vector.extract_strided_slice %20 {offsets = [0, 384], sizes = [32, 128], strides = [1, 1]} : vector<32x1024xf32> to vector<32x128xf32>
    %70 = arith.mulf %67, %69 : vector<32x128xf32>
    %71 = arith.addf %65, %70 : vector<32x128xf32>
    %72 = arith.subf %32, %45 : vector<32x128xf32>
    %73 = math.exp %72 : vector<32x128xf32>
    %74 = arith.addf %68, %73 : vector<32x128xf32>
    %75 = vector.extract_strided_slice %20 {offsets = [0, 512], sizes = [32, 128], strides = [1, 1]} : vector<32x1024xf32> to vector<32x128xf32>
    %76 = arith.mulf %73, %75 : vector<32x128xf32>
    %77 = arith.addf %71, %76 : vector<32x128xf32>
    %78 = arith.subf %34, %45 : vector<32x128xf32>
    %79 = math.exp %78 : vector<32x128xf32>
    %80 = arith.addf %74, %79 : vector<32x128xf32>
    %81 = vector.extract_strided_slice %20 {offsets = [0, 640], sizes = [32, 128], strides = [1, 1]} : vector<32x1024xf32> to vector<32x128xf32>
    %82 = arith.mulf %79, %81 : vector<32x128xf32>
    %83 = arith.addf %77, %82 : vector<32x128xf32>
    %84 = arith.subf %36, %45 : vector<32x128xf32>
    %85 = math.exp %84 : vector<32x128xf32>
    %86 = arith.addf %80, %85 : vector<32x128xf32>
    %87 = vector.extract_strided_slice %20 {offsets = [0, 768], sizes = [32, 128], strides = [1, 1]} : vector<32x1024xf32> to vector<32x128xf32>
    %88 = arith.mulf %85, %87 : vector<32x128xf32>
    %89 = arith.addf %83, %88 : vector<32x128xf32>
    %90 = arith.subf %38, %45 : vector<32x128xf32>
    %91 = math.exp %90 : vector<32x128xf32>
    %92 = arith.addf %86, %91 : vector<32x128xf32>
    %93 = vector.extract_strided_slice %20 {offsets = [0, 896], sizes = [32, 128], strides = [1, 1]} : vector<32x1024xf32> to vector<32x128xf32>
    %94 = arith.mulf %91, %93 : vector<32x128xf32>
    %95 = arith.addf %89, %94 : vector<32x128xf32>
    %96 = tpu.reciprocal %92 : vector<32x128xf32> -> vector<32x128xf32>
    %97 = arith.mulf %95, %96 : vector<32x128xf32>
    %c0_26 = arith.constant 0 : index
    %c0_27 = arith.constant 0 : index
    %98 = vector.load %arg10[%c0_26, %c0_27] : memref<128x128xf32, #tpu.memory_space<vmem>>, vector<128x128xf32>
    %cst_28 = arith.constant dense<0.000000e+00> : vector<32x128xf32>
    %99 = tpu.matmul %97, %98, %cst_28 {dimension_numbers = #tpu.dot_dimension_numbers<[1], [1], [0], [0], [0, 0, 1, 0], [], []>} : vector<32x128xf32>, vector<128x128xf32>, vector<32x128xf32> -> vector<32x128xf32>
    %c0_29 = arith.constant 0 : index
    %c0_30 = arith.constant 0 : index
    %100 = vector.load %arg11[%c0_29, %c0_30] : memref<1x128xf32, #tpu.memory_space<vmem>>, vector<1x128xf32>
    %101 = vector.broadcast %100 : vector<1x128xf32> to vector<32x128xf32>
    %102 = arith.addf %99, %101 : vector<32x128xf32>
    %c0_31 = arith.constant 0 : index
    %c0_32 = arith.constant 0 : index
    %103 = vector.load %arg13[%c0_31, %c0_32] : memref<32x128xf32, #tpu.memory_space<vmem>>, vector<32x128xf32>
    tpu.vector_store %arg13[%c0_31, %c0_32], %102 {strides = array<i32>} : memref<32x128xf32, #tpu.memory_space<vmem>>, vector<32x128xf32>,
    return
  }
  func.func @transform_0(%arg0: i32) -> (i32, i32) {
    %c0_i32 = arith.constant 0 : i32
    %c0_i32_0 = arith.constant 0 : i32
    return %arg0, %c0_i32 : i32, i32
  }
  func.func @transform_1(%arg0: i32) -> (i32, i32) {
    %c0_i32 = arith.constant 0 : i32
    %c0_i32_0 = arith.constant 0 : i32
    return %arg0, %c0_i32 : i32, i32
  }
  func.func @transform_2(%arg0: i32) -> (i32, i32) {
    %c0_i32 = arith.constant 0 : i32
    %c0_i32_0 = arith.constant 0 : i32
    return %arg0, %c0_i32 : i32, i32
  }
  func.func @transform_3(%arg0: i32) -> (i32, i32) {
    %c0_i32 = arith.constant 0 : i32
    %c0_i32_0 = arith.constant 0 : i32
    %c0_i32_1 = arith.constant 0 : i32
    return %c0_i32, %c0_i32_0 : i32, i32
  }
  func.func @transform_4(%arg0: i32) -> (i32, i32) {
    %c0_i32 = arith.constant 0 : i32
    %c0_i32_0 = arith.constant 0 : i32
    %c0_i32_1 = arith.constant 0 : i32
    return %c0_i32, %c0_i32_0 : i32, i32
  }
  func.func @transform_5(%arg0: i32) -> (i32, i32) {
    %c0_i32 = arith.constant 0 : i32
    %c0_i32_0 = arith.constant 0 : i32
    %c0_i32_1 = arith.constant 0 : i32
    return %c0_i32, %c0_i32_0 : i32, i32
  }
  func.func @transform_6(%arg0: i32) -> (i32, i32) {
    %c0_i32 = arith.constant 0 : i32
    %c0_i32_0 = arith.constant 0 : i32
    %c0_i32_1 = arith.constant 0 : i32
    return %c0_i32, %c0_i32_0 : i32, i32
  }
  func.func @transform_7(%arg0: i32) -> (i32, i32) {
    %c0_i32 = arith.constant 0 : i32
    %c0_i32_0 = arith.constant 0 : i32
    %c0_i32_1 = arith.constant 0 : i32
    return %c0_i32, %c0_i32_0 : i32, i32
  }
  func.func @transform_8(%arg0: i32) -> (i32, i32) {
    %c0_i32 = arith.constant 0 : i32
    %c0_i32_0 = arith.constant 0 : i32
    %c0_i32_1 = arith.constant 0 : i32
    return %c0_i32, %c0_i32_0 : i32, i32
  }
  func.func @transform_9(%arg0: i32) -> (i32, i32) {
    %c0_i32 = arith.constant 0 : i32
    %c0_i32_0 = arith.constant 0 : i32
    %c0_i32_1 = arith.constant 0 : i32
    return %c0_i32, %c0_i32_0 : i32, i32
  }
  func.func @transform_10(%arg0: i32) -> (i32, i32) {
    %c0_i32 = arith.constant 0 : i32
    %c0_i32_0 = arith.constant 0 : i32
    %c0_i32_1 = arith.constant 0 : i32
    return %c0_i32, %c0_i32_0 : i32, i32
  }
  func.func @transform_11(%arg0: i32) -> (i32, i32) {
    %c0_i32 = arith.constant 0 : i32
    %c0_i32_0 = arith.constant 0 : i32
    %c0_i32_1 = arith.constant 0 : i32
    return %c0_i32, %c0_i32_0 : i32, i32
  }
  func.func @transform_12(%arg0: i32) -> (i32, i32) {
    %c0_i32 = arith.constant 0 : i32
    %c0_i32_0 = arith.constant 0 : i32
    return %arg0, %c0_i32 : i32, i32
  }
}

</mosaic_0001>

<llo_original>
// kernel: tpu_custom_call.1
$region0: #{tpu_custom_call.1}
  #allocation0 [shape = 'u32[]', space=smem, size = 0x4, offset = 0x4, fixed_abs, tag = 'smem constant byte address 0x4 - core index']
  #allocation1 [shape = 'u32[144,128]{1,0:T(1,128)}', space=vmem, size = 0x12000, scoped, tag = 'internal scratch']
  %s0 = inlined_call_operand.hbm [shape: f32[32,128], index: 0, kind: input, shape index: {}]
  %s1 = inlined_call_operand.hbm [shape: f32[32,128], index: 1, kind: input, shape index: {}]
  %s2 = inlined_call_operand.hbm [shape: f32[32,128], index: 2, kind: input, shape index: {}]
  %s3 = inlined_call_operand.hbm [shape: f32[128,128], index: 3, kind: input, shape index: {}]
  %s4 = inlined_call_operand.vmem [shape: f32[1,128], index: 4, kind: input, shape index: {}]
  %s5 = inlined_call_operand.hbm [shape: f32[128,128], index: 5, kind: input, shape index: {}]
  %s6 = inlined_call_operand.vmem [shape: f32[1,128], index: 6, kind: input, shape index: {}]
  %s7 = inlined_call_operand.hbm [shape: f32[128,128], index: 7, kind: input, shape index: {}]
  %s8 = inlined_call_operand.vmem [shape: f32[1,128], index: 8, kind: input, shape index: {}]
  %s9 = inlined_call_operand.hbm [shape: f32[128,128], index: 9, kind: input, shape index: {}]
  %s10 = inlined_call_operand.vmem [shape: f32[1,128], index: 10, kind: input, shape index: {}]
  %s11 = inlined_call_operand.hbm [shape: f32[128,1024], index: 11, kind: input, shape index: {}]
  %s12 = inlined_call_operand.hbm [shape: f32[32,128], index: 12, kind: output, shape index: {}]
  %s13 = sld [smem:[#allocation0]]
  $region90: #{tpu_custom_call.1} parent=0
    _
  %s15 = ssub.s32 1, %s13
  %s16 = scalar_select 0, %s15, %s13
  $region1: #{tpu_custom_call.1} parent=0
    #allocation2 [shape = 'u8[16384]{0}', space=vmem, size = 0x4000, scoped, tag = 'input window, operand 0, single buffered']
    #allocation3 [shape = 's32[1]{0}', space=sflag, size = 0x4, scoped, tag = 'scoped memory for tpu_custom_call.1']
    #allocation4 [shape = 's32[1]{0}', space=sflag, size = 0x4, scoped, tag = 'scoped memory for tpu_custom_call.1']
    #allocation5 [shape = 'u8[16384]{0}', space=vmem, size = 0x4000, scoped, tag = 'input window, operand 1, single buffered']
    #allocation6 [shape = 's32[1]{0}', space=sflag, size = 0x4, scoped, tag = 'scoped memory for tpu_custom_call.1']
    #allocation7 [shape = 'u8[16384]{0}', space=vmem, size = 0x4000, scoped, tag = 'input window, operand 2, single buffered']
    #allocation8 [shape = 'u8[65536]{0}', space=vmem, size = 0x10000, scoped, tag = 'input window, operand 3, single buffered']
    #allocation9 [shape = 's32[1]{0}', space=sflag, size = 0x4, scoped, tag = 'scoped memory for tpu_custom_call.1']
    #allocation10 [shape = 'u8[65536]{0}', space=vmem, size = 0x10000, scoped, tag = 'input window, operand 5, single buffered']
    #allocation11 [shape = 'u8[65536]{0}', space=vmem, size = 0x10000, scoped, tag = 'input window, operand 7, single buffered']
    #allocation12 [shape = 's32[1]{0}', space=sflag, size = 0x4, scoped, tag = 'scoped memory for tpu_custom_call.1']
    #allocation13 [shape = 'u8[65536]{0}', space=vmem, size = 0x10000, scoped, tag = 'input window, operand 9, single buffered']
    #allocation14 [shape = 'u8[524288]{0}', space=vmem, size = 0x80000, scoped, tag = 'input window, operand 11, single buffered']
    #allocation15 [shape = 's32[1]{0}', space=sflag, size = 0x4, scoped, tag = 'scoped memory for tpu_custom_call.1']
    #allocation16 [shape = 'u8[16384]{0}', space=vmem, size = 0x4000, scoped, tag = 'output window, operand 0, single buffered']
    %17 = vsyncpa [#allocation3], 0
    %18 = vsyncpa [#allocation6], 0
    %19 = vsyncpa [#allocation9], 0
    %20 = vsyncpa [#allocation12], 0
    %21 = vsyncpa [#allocation15], 0
    %22 = vsyncpa [#allocation4], 0
    // Predicated region
    $region2: #{tpu_custom_call.1} parent=1 // pred_check
      _
    $region3: #{tpu_custom_call.1} parent=1 // pred_check_branch
      %24 = sbr.rel (0) target = $region5
    $region4: #{tpu_custom_call.1} parent=1 // pred_region
      %s26 = ssub.s32 512, 512
      %27 = vsyncadd [#allocation3], %s26
      %s28 = sshll.u32 [#allocation2], 4
      %s29 = int_to_ptr.vmem [resolvable:$true] %s28
      %34 = dma.hbm_to_vmem [thread:$0]  %s0, 512, %s29, [#allocation3], 128, 128, 8
    $region5: #{tpu_custom_call.1} parent=1 // pred_fallthru
      _
    // Predicated region
    $region6: #{tpu_custom_call.1} parent=1 // pred_check
      _
    $region7: #{tpu_custom_call.1} parent=1 // pred_check_branch
      %36 = sbr.rel (0) target = $region9
    $region8: #{tpu_custom_call.1} parent=1 // pred_region
      %s38 = ssub.s32 512, 512
      %39 = vsyncadd [#allocation6], %s38
      %s40 = sshll.u32 [#allocation5], 4
      %s41 = int_to_ptr.vmem [resolvable:$true] %s40
      %46 = dma.hbm_to_vmem [thread:$0]  %s1, 512, %s41, [#allocation6], 128, 128, 8
    $region9: #{tpu_custom_call.1} parent=1 // pred_fallthru
      _
    // Predicated region
    $region10: #{tpu_custom_call.1} parent=1 // pred_check
      _
    $region11: #{tpu_custom_call.1} parent=1 // pred_check_branch
      %48 = sbr.rel (0) target = $region13
    $region12: #{tpu_custom_call.1} parent=1 // pred_region
      %s50 = ssub.s32 512, 512
      %51 = vsyncadd [#allocation6], %s50
      %s52 = sshll.u32 [#allocation7], 4
      %s53 = int_to_ptr.vmem [resolvable:$true] %s52
      %58 = dma.hbm_to_vmem [thread:$0]  %s2, 512, %s53, [#allocation6], 128, 128, 8
    $region13: #{tpu_custom_call.1} parent=1 // pred_fallthru
      _
    // Predicated region
    $region14: #{tpu_custom_call.1} parent=1 // pred_check
      _
    $region15: #{tpu_custom_call.1} parent=1 // pred_check_branch
      %60 = sbr.rel (0) target = $region17
    $region16: #{tpu_custom_call.1} parent=1 // pred_region
      %s62 = ssub.s32 2048, 2048
      %63 = vsyncadd [#allocation9], %s62
      %s64 = sshll.u32 [#allocation8], 4
      %s65 = int_to_ptr.vmem [resolvable:$true] %s64
      %70 = dma.hbm_to_vmem [thread:$0]  %s3, 2048, %s65, [#allocation9], 128, 128, 8
    $region17: #{tpu_custom_call.1} parent=1 // pred_fallthru
      _
    // Predicated region
    $region18: #{tpu_custom_call.1} parent=1 // pred_check
      _
    $region19: #{tpu_custom_call.1} parent=1 // pred_check_branch
      %72 = sbr.rel (0) target = $region21
    $region20: #{tpu_custom_call.1} parent=1 // pred_region
      _
    $region21: #{tpu_custom_call.1} parent=1 // pred_fallthru
      _
    // Predicated region
    $region22: #{tpu_custom_call.1} parent=1 // pred_check
      _
    $region23: #{tpu_custom_call.1} parent=1 // pred_check_branch
      %74 = sbr.rel (0) target = $region25
    $region24: #{tpu_custom_call.1} parent=1 // pred_region
      %s76 = ssub.s32 2048, 2048
      %77 = vsyncadd [#allocation9], %s76
      %s78 = sshll.u32 [#allocation10], 4
      %s79 = int_to_ptr.vmem [resolvable:$true] %s78
      %84 = dma.hbm_to_vmem [thread:$0]  %s5, 2048, %s79, [#allocation9], 128, 128, 8
    $region25: #{tpu_custom_call.1} parent=1 // pred_fallthru
      _
    // Predicated region
    $region26: #{tpu_custom_call.1} parent=1 // pred_check
      _
    $region27: #{tpu_custom_call.1} parent=1 // pred_check_branch
      %86 = sbr.rel (0) target = $region29
    $region28: #{tpu_custom_call.1} parent=1 // pred_region
      _
    $region29: #{tpu_custom_call.1} parent=1 // pred_fallthru
      _
    // Predicated region
    $region30: #{tpu_custom_call.1} parent=1 // pred_check
      _
    $region31: #{tpu_custom_call.1} parent=1 // pred_check_branch
      %88 = sbr.rel (0) target = $region33
    $region32: #{tpu_custom_call.1} parent=1 // pred_region
      %s90 = ssub.s32 2048, 2048
      %91 = vsyncadd [#allocation12], %s90
      %s92 = sshll.u32 [#allocation11], 4
      %s93 = int_to_ptr.vmem [resolvable:$true] %s92
      %98 = dma.hbm_to_vmem [thread:$0]  %s7, 2048, %s93, [#allocation12], 128, 128, 8
    $region33: #{tpu_custom_call.1} parent=1 // pred_fallthru
      _
    // Predicated region
    $region34: #{tpu_custom_call.1} parent=1 // pred_check
      _
    $region35: #{tpu_custom_call.1} parent=1 // pred_check_branch
      %100 = sbr.rel (0) target = $region37
    $region36: #{tpu_custom_call.1} parent=1 // pred_region
      _
    $region37: #{tpu_custom_call.1} parent=1 // pred_fallthru
      _
    // Predicated region
    $region38: #{tpu_custom_call.1} parent=1 // pred_check
      _
    $region39: #{tpu_custom_call.1} parent=1 // pred_check_branch
      %102 = sbr.rel (0) target = $region41
    $region40: #{tpu_custom_call.1} parent=1 // pred_region
      %s104 = ssub.s32 2048, 2048
      %105 = vsyncadd [#allocation12], %s104
      %s106 = sshll.u32 [#allocation13], 4
      %s107 = int_to_ptr.vmem [resolvable:$true] %s106
      %112 = dma.hbm_to_vmem [thread:$0]  %s9, 2048, %s107, [#allocation12], 128, 128, 8
    $region41: #{tpu_custom_call.1} parent=1 // pred_fallthru
      _
    // Predicated region
    $region42: #{tpu_custom_call.1} parent=1 // pred_check
      _
    $region43: #{tpu_custom_call.1} parent=1 // pred_check_branch
      %114 = sbr.rel (0) target = $region45
    $region44: #{tpu_custom_call.1} parent=1 // pred_region
      _
    $region45: #{tpu_custom_call.1} parent=1 // pred_fallthru
      _
    // Predicated region
    $region46: #{tpu_custom_call.1} parent=1 // pred_check
      _
    $region47: #{tpu_custom_call.1} parent=1 // pred_check_branch
      %116 = sbr.rel (0) target = $region49
    $region48: #{tpu_custom_call.1} parent=1 // pred_region
      %s118 = ssub.s32 16384, 16384
      %119 = vsyncadd [#allocation15], %s118
      %s120 = sshll.u32 [#allocation14], 4
      %s121 = int_to_ptr.vmem [resolvable:$true] %s120
      %126 = dma.hbm_to_vmem [thread:$0]  %s11, 16384, %s121, [#allocation15], 1024, 1024, 64
    $region49: #{tpu_custom_call.1} parent=1 // pred_fallthru
      _
    // Predicated region
    $region50: #{tpu_custom_call.1} parent=1 // pred_check
      _
    $region51: #{tpu_custom_call.1} parent=1 // pred_check_branch
      %128 = sbr.rel (0) target = $region53
    $region52: #{tpu_custom_call.1} parent=1 // pred_region
      %129 = dma.done [#allocation3], 512
    $region53: #{tpu_custom_call.1} parent=1 // pred_fallthru
      _
    // Predicated region
    $region54: #{tpu_custom_call.1} parent=1 // pred_check
      _
    $region55: #{tpu_custom_call.1} parent=1 // pred_check_branch
      %131 = sbr.rel (0) target = $region57
    $region56: #{tpu_custom_call.1} parent=1 // pred_region
      %132 = dma.done [#allocation6], 512
    $region57: #{tpu_custom_call.1} parent=1 // pred_fallthru
      _
    // Predicated region
    $region58: #{tpu_custom_call.1} parent=1 // pred_check
      _
    $region59: #{tpu_custom_call.1} parent=1 // pred_check_branch
      %134 = sbr.rel (0) target = $region61
    $region60: #{tpu_custom_call.1} parent=1 // pred_region
      %135 = dma.done [#allocation6], 512
    $region61: #{tpu_custom_call.1} parent=1 // pred_fallthru
      _
    // Predicated region
    $region62: #{tpu_custom_call.1} parent=1 // pred_check
      _
    $region63: #{tpu_custom_call.1} parent=1 // pred_check_branch
      %137 = sbr.rel (0) target = $region65
    $region64: #{tpu_custom_call.1} parent=1 // pred_region
      %138 = dma.done [#allocation9], 2048
    $region65: #{tpu_custom_call.1} parent=1 // pred_fallthru
      _
    // Predicated region
    $region66: #{tpu_custom_call.1} parent=1 // pred_check
      _
    $region67: #{tpu_custom_call.1} parent=1 // pred_check_branch
      %140 = sbr.rel (0) target = $region69
    $region68: #{tpu_custom_call.1} parent=1 // pred_region
      %141 = dma.done [#allocation9], 2048
    $region69: #{tpu_custom_call.1} parent=1 // pred_fallthru
      _
    // Predicated region
    $region70: #{tpu_custom_call.1} parent=1 // pred_check
      _
    $region71: #{tpu_custom_call.1} parent=1 // pred_check_branch
      %143 = sbr.rel (0) target = $region73
    $region72: #{tpu_custom_call.1} parent=1 // pred_region
      %144 = dma.done [#allocation12], 2048
    $region73: #{tpu_custom_call.1} parent=1 // pred_fallthru
      _
    // Predicated region
    $region74: #{tpu_custom_call.1} parent=1 // pred_check
      _
    $region75: #{tpu_custom_call.1} parent=1 // pred_check_branch
      %146 = sbr.rel (0) target = $region77
    $region76: #{tpu_custom_call.1} parent=1 // pred_region
      %147 = dma.done [#allocation12], 2048
    $region77: #{tpu_custom_call.1} parent=1 // pred_fallthru
      _
    // Predicated region
    $region78: #{tpu_custom_call.1} parent=1 // pred_check
      _
    $region79: #{tpu_custom_call.1} parent=1 // pred_check_branch
      %149 = sbr.rel (0) target = $region81
    $region80: #{tpu_custom_call.1} parent=1 // pred_region
      %150 = dma.done [#allocation15], 16384
    $region81: #{tpu_custom_call.1} parent=1 // pred_fallthru
      _
    %v151 = vld [vmem:[#allocation2] sm:$0xff]
    %v152 = vld [vmem:[#allocation2 + $0x8] sm:$0xff]
    %v153 = vld [vmem:[#allocation2 + $0x10] sm:$0xff]
    %v154 = vld [vmem:[#allocation2 + $0x18] sm:$0xff]
    %v155 = vld [vmem:[#allocation5] sm:$0xff]
    %v156 = vld [vmem:[#allocation5 + $0x8] sm:$0xff]
    %v157 = vld [vmem:[#allocation5 + $0x10] sm:$0xff]
    %v158 = vld [vmem:[#allocation5 + $0x18] sm:$0xff]
    %v159 = vld [vmem:[#allocation7] sm:$0xff]
    %v160 = vld [vmem:[#allocation7 + $0x8] sm:$0xff]
    %v161 = vld [vmem:[#allocation7 + $0x10] sm:$0xff]
    %v162 = vld [vmem:[#allocation7 + $0x18] sm:$0xff]
    %v163 = vld [vmem:[#allocation8] sm:$0xff]
    %v164 = vld [vmem:[#allocation8 + $0x8] sm:$0xff]
    %v165 = vld [vmem:[#allocation8 + $0x10] sm:$0xff]
    %v166 = vld [vmem:[#allocation8 + $0x18] sm:$0xff]
    %v167 = vld [vmem:[#allocation8 + $0x20] sm:$0xff]
    %v168 = vld [vmem:[#allocation8 + $0x28] sm:$0xff]
    %v169 = vld [vmem:[#allocation8 + $0x30] sm:$0xff]
    %v170 = vld [vmem:[#allocation8 + $0x38] sm:$0xff]
    %v171 = vld [vmem:[#allocation8 + $0x40] sm:$0xff]
    %v172 = vld [vmem:[#allocation8 + $0x48] sm:$0xff]
    %v173 = vld [vmem:[#allocation8 + $0x50] sm:$0xff]
    %v174 = vld [vmem:[#allocation8 + $0x58] sm:$0xff]
    %v175 = vld [vmem:[#allocation8 + $0x60] sm:$0xff]
    %v176 = vld [vmem:[#allocation8 + $0x68] sm:$0xff]
    %v177 = vld [vmem:[#allocation8 + $0x70] sm:$0xff]
    %v178 = vld [vmem:[#allocation8 + $0x78] sm:$0xff]
    %v179 = vld [vmem:[%s4] sm:$0x1]
    %v181 = vlaneseq
    %v182 = vshrl.u32 %v181, 7
    %v183 = vsub.s32 0, %v182
    %v184 = vrot.slane %v179, %v183
    %186 = vmatprep.subr.mxu0 0.0
    %187 = vmatpush1.xpose.msra.mxu0 %v178
    %188 = vmatprep.subr.mxu0 0.0
    %189 = vmatpush1.xpose.msra.mxu0 %v177
    %190 = vmatprep.subr.mxu0 0.0
    %191 = vmatpush1.xpose.msra.mxu0 %v176
    %192 = vmatprep.subr.mxu0 0.0
    %193 = vmatpush1.xpose.msra.mxu0 %v175
    %194 = vmatprep.subr.mxu0 0.0
    %195 = vmatpush1.xpose.msra.mxu0 %v174
    %196 = vmatprep.subr.mxu0 0.0
    %197 = vmatpush1.xpose.msra.mxu0 %v173
    %198 = vmatprep.subr.mxu0 0.0
    %199 = vmatpush1.xpose.msra.mxu0 %v172
    %200 = vmatprep.subr.mxu0 0.0
    %201 = vmatpush1.xpose.msra.mxu0 %v171
    %202 = vmatprep.subr.mxu0 0.0
    %203 = vmatpush1.xpose.msra.mxu0 %v170
    %204 = vmatprep.subr.mxu0 0.0
    %205 = vmatpush1.xpose.msra.mxu0 %v169
    %206 = vmatprep.subr.mxu0 0.0
    %207 = vmatpush1.xpose.msra.mxu0 %v168
    %208 = vmatprep.subr.mxu0 0.0
    %209 = vmatpush1.xpose.msra.mxu0 %v167
    %210 = vmatprep.subr.mxu0 0.0
    %211 = vmatpush1.xpose.msra.mxu0 %v166
    %212 = vmatprep.subr.mxu0 0.0
    %213 = vmatpush1.xpose.msra.mxu0 %v165
    %214 = vmatprep.subr.mxu0 0.0
    %215 = vmatpush1.xpose.msra.mxu0 %v164
    %216 = vmatprep.subr.mxu0 0.0
    %217 = vmatpush1.xpose.msra.mxu0 %v163
    %218 = vmatprep.subr.mxu0 0.0
    %219 = vmatpush2.xpose.msra.mxu0 0.0
    %220 = vmatprep.subr.mxu0 0.0
    %221 = vmatpush2.xpose.msra.mxu0 0.0
    %222 = vmatprep.subr.mxu0 0.0
    %223 = vmatpush2.xpose.msra.mxu0 0.0
    %224 = vmatprep.subr.mxu0 0.0
    %225 = vmatpush2.xpose.msra.mxu0 0.0
    %226 = vmatprep.subr.mxu0 0.0
    %227 = vmatpush2.xpose.msra.mxu0 0.0
    %228 = vmatprep.subr.mxu0 0.0
    %229 = vmatpush2.xpose.msra.mxu0 0.0
    %230 = vmatprep.subr.mxu0 0.0
    %231 = vmatpush2.xpose.msra.mxu0 0.0
    %232 = vmatprep.subr.mxu0 0.0
    %233 = vmatpush2.xpose.msra.mxu0 0.0
    %234 = vmatprep.subr.mxu0 0.0
    %235 = vmatpush2.xpose.msra.mxu0 0.0
    %236 = vmatprep.subr.mxu0 0.0
    %237 = vmatpush2.xpose.msra.mxu0 0.0
    %238 = vmatprep.subr.mxu0 0.0
    %239 = vmatpush2.xpose.msra.mxu0 0.0
    %240 = vmatprep.subr.mxu0 0.0
    %241 = vmatpush2.xpose.msra.mxu0 0.0
    %242 = vmatprep.subr.mxu0 0.0
    %243 = vmatpush2.xpose.msra.mxu0 0.0
    %244 = vmatprep.subr.mxu0 0.0
    %245 = vmatpush2.xpose.msra.mxu0 0.0
    %246 = vmatprep.subr.mxu0 0.0
    %247 = vmatpush2.xpose.msra.mxu0 0.0
    %248 = vmatprep.subr.mxu0 0.0
    %249 = vmatpush2.xpose.msra.mxu0 0.0
    %250 = vmatprep.mubr.f32.mxu0 0.0
    %251 = vmatmul.mubr.f32.gmra.mxu0 %v151
    %v252 = vpop.f32.mrf.mxu0
    %v253 = vadd.f32 %v184, %v252
    %v254 = vpop.f32.mrf.mxu0
    %255 = vmatprep.mubr.f32.mxu0 0.0
    %256 = vmatmul.mubr.f32.gmra.mxu0 %v152
    %v257 = vpop.f32.mrf.mxu0
    %v258 = vadd.f32 %v184, %v257
    %v259 = vpop.f32.mrf.mxu0
    %260 = vmatprep.mubr.f32.mxu0 0.0
    %261 = vmatmul.mubr.f32.gmra.mxu0 %v153
    %v262 = vpop.f32.mrf.mxu0
    %v263 = vadd.f32 %v184, %v262
    %v264 = vpop.f32.mrf.mxu0
    %265 = vmatprep.mubr.f32.mxu0 0.0
    %266 = vmatmul.mubr.f32.gmra.mxu0 %v154
    %v267 = vpop.f32.mrf.mxu0
    %v268 = vadd.f32 %v184, %v267
    %v269 = vpop.f32.mrf.mxu0
    %270 = vdwg.mxu0
    %v271 = vld [vmem:[#allocation10] sm:$0xff]
    %v272 = vld [vmem:[#allocation10 + $0x8] sm:$0xff]
    %v273 = vld [vmem:[#allocation10 + $0x10] sm:$0xff]
    %v274 = vld [vmem:[#allocation10 + $0x18] sm:$0xff]
    %v275 = vld [vmem:[#allocation10 + $0x20] sm:$0xff]
    %v276 = vld [vmem:[#allocation10 + $0x28] sm:$0xff]
    %v277 = vld [vmem:[#allocation10 + $0x30] sm:$0xff]
    %v278 = vld [vmem:[#allocation10 + $0x38] sm:$0xff]
    %v279 = vld [vmem:[#allocation10 + $0x40] sm:$0xff]
    %v280 = vld [vmem:[#allocation10 + $0x48] sm:$0xff]
    %v281 = vld [vmem:[#allocation10 + $0x50] sm:$0xff]
    %v282 = vld [vmem:[#allocation10 + $0x58] sm:$0xff]
    %v283 = vld [vmem:[#allocation10 + $0x60] sm:$0xff]
    %v284 = vld [vmem:[#allocation10 + $0x68] sm:$0xff]
    %v285 = vld [vmem:[#allocation10 + $0x70] sm:$0xff]
    %v286 = vld [vmem:[#allocation10 + $0x78] sm:$0xff]
    %v287 = vld [vmem:[%s6] sm:$0x1]
    %v289 = vlaneseq
    %v290 = vshrl.u32 %v289, 7
    %v291 = vsub.s32 0, %v290
    %v292 = vrot.slane %v287, %v291
    %294 = vmatprep.subr.mxu0 0.0
    %295 = vmatpush1.xpose.msra.mxu0 %v286
    %296 = vmatprep.subr.mxu0 0.0
    %297 = vmatpush1.xpose.msra.mxu0 %v285
    %298 = vmatprep.subr.mxu0 0.0
    %299 = vmatpush1.xpose.msra.mxu0 %v284
    %300 = vmatprep.subr.mxu0 0.0
    %301 = vmatpush1.xpose.msra.mxu0 %v283
    %302 = vmatprep.subr.mxu0 0.0
    %303 = vmatpush1.xpose.msra.mxu0 %v282
    %304 = vmatprep.subr.mxu0 0.0
    %305 = vmatpush1.xpose.msra.mxu0 %v281
    %306 = vmatprep.subr.mxu0 0.0
    %307 = vmatpush1.xpose.msra.mxu0 %v280
    %308 = vmatprep.subr.mxu0 0.0
    %309 = vmatpush1.xpose.msra.mxu0 %v279
    %310 = vmatprep.subr.mxu0 0.0
    %311 = vmatpush1.xpose.msra.mxu0 %v278
    %312 = vmatprep.subr.mxu0 0.0
    %313 = vmatpush1.xpose.msra.mxu0 %v277
    %314 = vmatprep.subr.mxu0 0.0
    %315 = vmatpush1.xpose.msra.mxu0 %v276
    %316 = vmatprep.subr.mxu0 0.0
    %317 = vmatpush1.xpose.msra.mxu0 %v275
    %318 = vmatprep.subr.mxu0 0.0
    %319 = vmatpush1.xpose.msra.mxu0 %v274
    %320 = vmatprep.subr.mxu0 0.0
    %321 = vmatpush1.xpose.msra.mxu0 %v273
    %322 = vmatprep.subr.mxu0 0.0
    %323 = vmatpush1.xpose.msra.mxu0 %v272
    %324 = vmatprep.subr.mxu0 0.0
    %325 = vmatpush1.xpose.msra.mxu0 %v271
    %326 = vmatprep.subr.mxu0 0.0
    %327 = vmatpush2.xpose.msra.mxu0 0.0
    %328 = vmatprep.subr.mxu0 0.0
    %329 = vmatpush2.xpose.msra.mxu0 0.0
    %330 = vmatprep.subr.mxu0 0.0
    %331 = vmatpush2.xpose.msra.mxu0 0.0
    %332 = vmatprep.subr.mxu0 0.0
    %333 = vmatpush2.xpose.msra.mxu0 0.0
    %334 = vmatprep.subr.mxu0 0.0
    %335 = vmatpush2.xpose.msra.mxu0 0.0
    %336 = vmatprep.subr.mxu0 0.0
    %337 = vmatpush2.xpose.msra.mxu0 0.0
    %338 = vmatprep.subr.mxu0 0.0
    %339 = vmatpush2.xpose.msra.mxu0 0.0
    %340 = vmatprep.subr.mxu0 0.0
    %341 = vmatpush2.xpose.msra.mxu0 0.0
    %342 = vmatprep.subr.mxu0 0.0
    %343 = vmatpush2.xpose.msra.mxu0 0.0
    %344 = vmatprep.subr.mxu0 0.0
    %345 = vmatpush2.xpose.msra.mxu0 0.0
    %346 = vmatprep.subr.mxu0 0.0
    %347 = vmatpush2.xpose.msra.mxu0 0.0
    %348 = vmatprep.subr.mxu0 0.0
    %349 = vmatpush2.xpose.msra.mxu0 0.0
    %350 = vmatprep.subr.mxu0 0.0
    %351 = vmatpush2.xpose.msra.mxu0 0.0
    %352 = vmatprep.subr.mxu0 0.0
    %353 = vmatpush2.xpose.msra.mxu0 0.0
    %354 = vmatprep.subr.mxu0 0.0
    %355 = vmatpush2.xpose.msra.mxu0 0.0
    %356 = vmatprep.subr.mxu0 0.0
    %357 = vmatpush2.xpose.msra.mxu0 0.0
    %358 = vmatprep.mubr.f32.mxu0 0.0
    %359 = vmatmul.mubr.f32.gmra.mxu0 %v155
    %v360 = vpop.f32.mrf.mxu0
    %v361 = vadd.f32 %v292, %v360
    %v362 = vpop.f32.mrf.mxu0
    %363 = vmatprep.mubr.f32.mxu0 0.0
    %364 = vmatmul.mubr.f32.gmra.mxu0 %v156
    %v365 = vpop.f32.mrf.mxu0
    %v366 = vadd.f32 %v292, %v365
    %v367 = vpop.f32.mrf.mxu0
    %368 = vmatprep.mubr.f32.mxu0 0.0
    %369 = vmatmul.mubr.f32.gmra.mxu0 %v157
    %v370 = vpop.f32.mrf.mxu0
    %v371 = vadd.f32 %v292, %v370
    %v372 = vpop.f32.mrf.mxu0
    %373 = vmatprep.mubr.f32.mxu0 0.0
    %374 = vmatmul.mubr.f32.gmra.mxu0 %v158
    %v375 = vpop.f32.mrf.mxu0
    %v376 = vadd.f32 %v292, %v375
    %v377 = vpop.f32.mrf.mxu0
    %378 = vdwg.mxu0
    %v379 = vld [vmem:[#allocation11] sm:$0xff]
    %v380 = vld [vmem:[#allocation11 + $0x8] sm:$0xff]
    %v381 = vld [vmem:[#allocation11 + $0x10] sm:$0xff]
    %v382 = vld [vmem:[#allocation11 + $0x18] sm:$0xff]
    %v383 = vld [vmem:[#allocation11 + $0x20] sm:$0xff]
    %v384 = vld [vmem:[#allocation11 + $0x28] sm:$0xff]
    %v385 = vld [vmem:[#allocation11 + $0x30] sm:$0xff]
    %v386 = vld [vmem:[#allocation11 + $0x38] sm:$0xff]
    %v387 = vld [vmem:[#allocation11 + $0x40] sm:$0xff]
    %v388 = vld [vmem:[#allocation11 + $0x48] sm:$0xff]
    %v389 = vld [vmem:[#allocation11 + $0x50] sm:$0xff]
    %v390 = vld [vmem:[#allocation11 + $0x58] sm:$0xff]
    %v391 = vld [vmem:[#allocation11 + $0x60] sm:$0xff]
    %v392 = vld [vmem:[#allocation11 + $0x68] sm:$0xff]
    %v393 = vld [vmem:[#allocation11 + $0x70] sm:$0xff]
    %v394 = vld [vmem:[#allocation11 + $0x78] sm:$0xff]
    %v395 = vld [vmem:[%s8] sm:$0x1]
    %v397 = vlaneseq
    %v398 = vshrl.u32 %v397, 7
    %v399 = vsub.s32 0, %v398
    %v400 = vrot.slane %v395, %v399
    %402 = vmatprep.subr.mxu0 0.0
    %403 = vmatpush1.xpose.msra.mxu0 %v394
    %404 = vmatprep.subr.mxu0 0.0
    %405 = vmatpush1.xpose.msra.mxu0 %v393
    %406 = vmatprep.subr.mxu0 0.0
    %407 = vmatpush1.xpose.msra.mxu0 %v392
    %408 = vmatprep.subr.mxu0 0.0
    %409 = vmatpush1.xpose.msra.mxu0 %v391
    %410 = vmatprep.subr.mxu0 0.0
    %411 = vmatpush1.xpose.msra.mxu0 %v390
    %412 = vmatprep.subr.mxu0 0.0
    %413 = vmatpush1.xpose.msra.mxu0 %v389
    %414 = vmatprep.subr.mxu0 0.0
    %415 = vmatpush1.xpose.msra.mxu0 %v388
    %416 = vmatprep.subr.mxu0 0.0
    %417 = vmatpush1.xpose.msra.mxu0 %v387
    %418 = vmatprep.subr.mxu0 0.0
    %419 = vmatpush1.xpose.msra.mxu0 %v386
    %420 = vmatprep.subr.mxu0 0.0
    %421 = vmatpush1.xpose.msra.mxu0 %v385
    %422 = vmatprep.subr.mxu0 0.0
    %423 = vmatpush1.xpose.msra.mxu0 %v384
    %424 = vmatprep.subr.mxu0 0.0
    %425 = vmatpush1.xpose.msra.mxu0 %v383
    %426 = vmatprep.subr.mxu0 0.0
    %427 = vmatpush1.xpose.msra.mxu0 %v382
    %428 = vmatprep.subr.mxu0 0.0
    %429 = vmatpush1.xpose.msra.mxu0 %v381
    %430 = vmatprep.subr.mxu0 0.0
    %431 = vmatpush1.xpose.msra.mxu0 %v380
    %432 = vmatprep.subr.mxu0 0.0
    %433 = vmatpush1.xpose.msra.mxu0 %v379
    %434 = vmatprep.subr.mxu0 0.0
    %435 = vmatpush2.xpose.msra.mxu0 0.0
    %436 = vmatprep.subr.mxu0 0.0
    %437 = vmatpush2.xpose.msra.mxu0 0.0
    %438 = vmatprep.subr.mxu0 0.0
    %439 = vmatpush2.xpose.msra.mxu0 0.0
    %440 = vmatprep.subr.mxu0 0.0
    %441 = vmatpush2.xpose.msra.mxu0 0.0
    %442 = vmatprep.subr.mxu0 0.0
    %443 = vmatpush2.xpose.msra.mxu0 0.0
    %444 = vmatprep.subr.mxu0 0.0
    %445 = vmatpush2.xpose.msra.mxu0 0.0
    %446 = vmatprep.subr.mxu0 0.0
    %447 = vmatpush2.xpose.msra.mxu0 0.0
    %448 = vmatprep.subr.mxu0 0.0
    %449 = vmatpush2.xpose.msra.mxu0 0.0
    %450 = vmatprep.subr.mxu0 0.0
    %451 = vmatpush2.xpose.msra.mxu0 0.0
    %452 = vmatprep.subr.mxu0 0.0
    %453 = vmatpush2.xpose.msra.mxu0 0.0
    %454 = vmatprep.subr.mxu0 0.0
    %455 = vmatpush2.xpose.msra.mxu0 0.0
    %456 = vmatprep.subr.mxu0 0.0
    %457 = vmatpush2.xpose.msra.mxu0 0.0
    %458 = vmatprep.subr.mxu0 0.0
    %459 = vmatpush2.xpose.msra.mxu0 0.0
    %460 = vmatprep.subr.mxu0 0.0
    %461 = vmatpush2.xpose.msra.mxu0 0.0
    %462 = vmatprep.subr.mxu0 0.0
    %463 = vmatpush2.xpose.msra.mxu0 0.0
    %464 = vmatprep.subr.mxu0 0.0
    %465 = vmatpush2.xpose.msra.mxu0 0.0
    %466 = vmatprep.mubr.f32.mxu0 0.0
    %467 = vmatmul.mubr.f32.gmra.mxu0 %v159
    %v468 = vpop.f32.mrf.mxu0
    %v469 = vadd.f32 %v400, %v468
    %v470 = vpop.f32.mrf.mxu0
    %471 = vmatprep.mubr.f32.mxu0 0.0
    %472 = vmatmul.mubr.f32.gmra.mxu0 %v160
    %v473 = vpop.f32.mrf.mxu0
    %v474 = vadd.f32 %v400, %v473
    %v475 = vpop.f32.mrf.mxu0
    %476 = vmatprep.mubr.f32.mxu0 0.0
    %477 = vmatmul.mubr.f32.gmra.mxu0 %v161
    %v478 = vpop.f32.mrf.mxu0
    %v479 = vadd.f32 %v400, %v478
    %v480 = vpop.f32.mrf.mxu0
    %481 = vmatprep.mubr.f32.mxu0 0.0
    %482 = vmatmul.mubr.f32.gmra.mxu0 %v162
    %v483 = vpop.f32.mrf.mxu0
    %v484 = vadd.f32 %v400, %v483
    %v485 = vpop.f32.mrf.mxu0
    %486 = vdwg.mxu0
    %v487 = vld [vmem:[#allocation14] sm:$0xff]
    %v488 = vld [vmem:[#allocation14 + $0x8] sm:$0xff]
    %v489 = vld [vmem:[#allocation14 + $0x10] sm:$0xff]
    %v490 = vld [vmem:[#allocation14 + $0x18] sm:$0xff]
    %v491 = vld [vmem:[#allocation14 + $0x20] sm:$0xff]
    %v492 = vld [vmem:[#allocation14 + $0x28] sm:$0xff]
    %v493 = vld [vmem:[#allocation14 + $0x30] sm:$0xff]
    %v494 = vld [vmem:[#allocation14 + $0x38] sm:$0xff]
    %v495 = vld [vmem:[#allocation14 + $0x40] sm:$0xff]
    %v496 = vld [vmem:[#allocation14 + $0x48] sm:$0xff]
    %v497 = vld [vmem:[#allocation14 + $0x50] sm:$0xff]
    %v498 = vld [vmem:[#allocation14 + $0x58] sm:$0xff]
    %v499 = vld [vmem:[#allocation14 + $0x60] sm:$0xff]
    %v500 = vld [vmem:[#allocation14 + $0x68] sm:$0xff]
    %v501 = vld [vmem:[#allocation14 + $0x70] sm:$0xff]
    %v502 = vld [vmem:[#allocation14 + $0x78] sm:$0xff]
    %v503 = vld [vmem:[#allocation14 + $0x80] sm:$0xff]
    %v504 = vld [vmem:[#allocation14 + $0x88] sm:$0xff]
    %v505 = vld [vmem:[#allocation14 + $0x90] sm:$0xff]
    %v506 = vld [vmem:[#allocation14 + $0x98] sm:$0xff]
    %v507 = vld [vmem:[#allocation14 + $0xa0] sm:$0xff]
    %v508 = vld [vmem:[#allocation14 + $0xa8] sm:$0xff]
    %v509 = vld [vmem:[#allocation14 + $0xb0] sm:$0xff]
    %v510 = vld [vmem:[#allocation14 + $0xb8] sm:$0xff]
    %v511 = vld [vmem:[#allocation14 + $0xc0] sm:$0xff]
    %v512 = vld [vmem:[#allocation14 + $0xc8] sm:$0xff]
    %v513 = vld [vmem:[#allocation14 + $0xd0] sm:$0xff]
    %v514 = vld [vmem:[#allocation14 + $0xd8] sm:$0xff]
    %v515 = vld [vmem:[#allocation14 + $0xe0] sm:$0xff]
    %v516 = vld [vmem:[#allocation14 + $0xe8] sm:$0xff]
    %v517 = vld [vmem:[#allocation14 + $0xf0] sm:$0xff]
    %v518 = vld [vmem:[#allocation14 + $0xf8] sm:$0xff]
    %v519 = vld [vmem:[#allocation14 + $0x100] sm:$0xff]
    %v520 = vld [vmem:[#allocation14 + $0x108] sm:$0xff]
    %v521 = vld [vmem:[#allocation14 + $0x110] sm:$0xff]
    %v522 = vld [vmem:[#allocation14 + $0x118] sm:$0xff]
    %v523 = vld [vmem:[#allocation14 + $0x120] sm:$0xff]
    %v524 = vld [vmem:[#allocation14 + $0x128] sm:$0xff]
    %v525 = vld [vmem:[#allocation14 + $0x130] sm:$0xff]
    %v526 = vld [vmem:[#allocation14 + $0x138] sm:$0xff]
    %v527 = vld [vmem:[#allocation14 + $0x140] sm:$0xff]
    %v528 = vld [vmem:[#allocation14 + $0x148] sm:$0xff]
    %v529 = vld [vmem:[#allocation14 + $0x150] sm:$0xff]
    %v530 = vld [vmem:[#allocation14 + $0x158] sm:$0xff]
    %v531 = vld [vmem:[#allocation14 + $0x160] sm:$0xff]
    %v532 = vld [vmem:[#allocation14 + $0x168] sm:$0xff]
    %v533 = vld [vmem:[#allocation14 + $0x170] sm:$0xff]
    %v534 = vld [vmem:[#allocation14 + $0x178] sm:$0xff]
    %v535 = vld [vmem:[#allocation14 + $0x180] sm:$0xff]
    %v536 = vld [vmem:[#allocation14 + $0x188] sm:$0xff]
    %v537 = vld [vmem:[#allocation14 + $0x190] sm:$0xff]
    %v538 = vld [vmem:[#allocation14 + $0x198] sm:$0xff]
    %v539 = vld [vmem:[#allocation14 + $0x1a0] sm:$0xff]
    %v540 = vld [vmem:[#allocation14 + $0x1a8] sm:$0xff]
    %v541 = vld [vmem:[#allocation14 + $0x1b0] sm:$0xff]
    %v542 = vld [vmem:[#allocation14 + $0x1b8] sm:$0xff]
    %v543 = vld [vmem:[#allocation14 + $0x1c0] sm:$0xff]
    %v544 = vld [vmem:[#allocation14 + $0x1c8] sm:$0xff]
    %v545 = vld [vmem:[#allocation14 + $0x1d0] sm:$0xff]
    %v546 = vld [vmem:[#allocation14 + $0x1d8] sm:$0xff]
    %v547 = vld [vmem:[#allocation14 + $0x1e0] sm:$0xff]
    %v548 = vld [vmem:[#allocation14 + $0x1e8] sm:$0xff]
    %v549 = vld [vmem:[#allocation14 + $0x1f0] sm:$0xff]
    %v550 = vld [vmem:[#allocation14 + $0x1f8] sm:$0xff]
    %v551 = vld [vmem:[#allocation14 + $0x200] sm:$0xff]
    %v552 = vld [vmem:[#allocation14 + $0x208] sm:$0xff]
    %v553 = vld [vmem:[#allocation14 + $0x210] sm:$0xff]
    %v554 = vld [vmem:[#allocation14 + $0x218] sm:$0xff]
    %v555 = vld [vmem:[#allocation14 + $0x220] sm:$0xff]
    %v556 = vld [vmem:[#allocation14 + $0x228] sm:$0xff]
    %v557 = vld [vmem:[#allocation14 + $0x230] sm:$0xff]
    %v558 = vld [vmem:[#allocation14 + $0x238] sm:$0xff]
    %v559 = vld [vmem:[#allocation14 + $0x240] sm:$0xff]
    %v560 = vld [vmem:[#allocation14 + $0x248] sm:$0xff]
    %v561 = vld [vmem:[#allocation14 + $0x250] sm:$0xff]
    %v562 = vld [vmem:[#allocation14 + $0x258] sm:$0xff]
    %v563 = vld [vmem:[#allocation14 + $0x260] sm:$0xff]
    %v564 = vld [vmem:[#allocation14 + $0x268] sm:$0xff]
    %v565 = vld [vmem:[#allocation14 + $0x270] sm:$0xff]
    %v566 = vld [vmem:[#allocation14 + $0x278] sm:$0xff]
    %v567 = vld [vmem:[#allocation14 + $0x280] sm:$0xff]
    %v568 = vld [vmem:[#allocation14 + $0x288] sm:$0xff]
    %v569 = vld [vmem:[#allocation14 + $0x290] sm:$0xff]
    %v570 = vld [vmem:[#allocation14 + $0x298] sm:$0xff]
    %v571 = vld [vmem:[#allocation14 + $0x2a0] sm:$0xff]
    %v572 = vld [vmem:[#allocation14 + $0x2a8] sm:$0xff]
    %v573 = vld [vmem:[#allocation14 + $0x2b0] sm:$0xff]
    %v574 = vld [vmem:[#allocation14 + $0x2b8] sm:$0xff]
    %v575 = vld [vmem:[#allocation14 + $0x2c0] sm:$0xff]
    %v576 = vld [vmem:[#allocation14 + $0x2c8] sm:$0xff]
    %v577 = vld [vmem:[#allocation14 + $0x2d0] sm:$0xff]
    %v578 = vld [vmem:[#allocation14 + $0x2d8] sm:$0xff]
    %v579 = vld [vmem:[#allocation14 + $0x2e0] sm:$0xff]
    %v580 = vld [vmem:[#allocation14 + $0x2e8] sm:$0xff]
    %v581 = vld [vmem:[#allocation14 + $0x2f0] sm:$0xff]
    %v582 = vld [vmem:[#allocation14 + $0x2f8] sm:$0xff]
    %v583 = vld [vmem:[#allocation14 + $0x300] sm:$0xff]
    %v584 = vld [vmem:[#allocation14 + $0x308] sm:$0xff]
    %v585 = vld [vmem:[#allocation14 + $0x310] sm:$0xff]
    %v586 = vld [vmem:[#allocation14 + $0x318] sm:$0xff]
    %v587 = vld [vmem:[#allocation14 + $0x320] sm:$0xff]
    %v588 = vld [vmem:[#allocation14 + $0x328] sm:$0xff]
    %v589 = vld [vmem:[#allocation14 + $0x330] sm:$0xff]
    %v590 = vld [vmem:[#allocation14 + $0x338] sm:$0xff]
    %v591 = vld [vmem:[#allocation14 + $0x340] sm:$0xff]
    %v592 = vld [vmem:[#allocation14 + $0x348] sm:$0xff]
    %v593 = vld [vmem:[#allocation14 + $0x350] sm:$0xff]
    %v594 = vld [vmem:[#allocation14 + $0x358] sm:$0xff]
    %v595 = vld [vmem:[#allocation14 + $0x360] sm:$0xff]
    %v596 = vld [vmem:[#allocation14 + $0x368] sm:$0xff]
    %v597 = vld [vmem:[#allocation14 + $0x370] sm:$0xff]
    %v598 = vld [vmem:[#allocation14 + $0x378] sm:$0xff]
    %v599 = vld [vmem:[#allocation14 + $0x380] sm:$0xff]
    %v600 = vld [vmem:[#allocation14 + $0x388] sm:$0xff]
    %v601 = vld [vmem:[#allocation14 + $0x390] sm:$0xff]
    %v602 = vld [vmem:[#allocation14 + $0x398] sm:$0xff]
    %v603 = vld [vmem:[#allocation14 + $0x3a0] sm:$0xff]
    %v604 = vld [vmem:[#allocation14 + $0x3a8] sm:$0xff]
    %v605 = vld [vmem:[#allocation14 + $0x3b0] sm:$0xff]
    %v606 = vld [vmem:[#allocation14 + $0x3b8] sm:$0xff]
    %v607 = vld [vmem:[#allocation14 + $0x3c0] sm:$0xff]
    %v608 = vld [vmem:[#allocation14 + $0x3c8] sm:$0xff]
    %v609 = vld [vmem:[#allocation14 + $0x3d0] sm:$0xff]
    %v610 = vld [vmem:[#allocation14 + $0x3d8] sm:$0xff]
    %v611 = vld [vmem:[#allocation14 + $0x3e0] sm:$0xff]
    %v612 = vld [vmem:[#allocation14 + $0x3e8] sm:$0xff]
    %v613 = vld [vmem:[#allocation14 + $0x3f0] sm:$0xff]
    %v614 = vld [vmem:[#allocation14 + $0x3f8] sm:$0xff]
    %615 = vmatprep.subr.mxu0 %v608
    %616 = vmatpush1.msra.mxu0 %v607
    %617 = vmatprep.subr.mxu0 %v600
    %618 = vmatpush1.msra.mxu0 %v599
    %619 = vmatprep.subr.mxu0 %v592
    %620 = vmatpush1.msra.mxu0 %v591
    %621 = vmatprep.subr.mxu0 %v584
    %622 = vmatpush1.msra.mxu0 %v583
    %623 = vmatprep.subr.mxu0 %v576
    %624 = vmatpush1.msra.mxu0 %v575
    %625 = vmatprep.subr.mxu0 %v568
    %626 = vmatpush1.msra.mxu0 %v567
    %627 = vmatprep.subr.mxu0 %v560
    %628 = vmatpush1.msra.mxu0 %v559
    %629 = vmatprep.subr.mxu0 %v552
    %630 = vmatpush1.msra.mxu0 %v551
    %631 = vmatprep.subr.mxu0 %v544
    %632 = vmatpush1.msra.mxu0 %v543
    %633 = vmatprep.subr.mxu0 %v536
    %634 = vmatpush1.msra.mxu0 %v535
    %635 = vmatprep.subr.mxu0 %v528
    %636 = vmatpush1.msra.mxu0 %v527
    %637 = vmatprep.subr.mxu0 %v520
    %638 = vmatpush1.msra.mxu0 %v519
    %639 = vmatprep.subr.mxu0 %v512
    %640 = vmatpush1.msra.mxu0 %v511
    %641 = vmatprep.subr.mxu0 %v504
    %642 = vmatpush1.msra.mxu0 %v503
    %643 = vmatprep.subr.mxu0 %v496
    %644 = vmatpush1.msra.mxu0 %v495
    %645 = vmatprep.subr.mxu0 %v488
    %646 = vmatpush1.msra.mxu0 %v487
    %647 = vmatprep.subr.mxu0 0.0
    %648 = vmatpush2.msra.mxu0 0.0
    %649 = vmatprep.subr.mxu0 0.0
    %650 = vmatpush2.msra.mxu0 0.0
    %651 = vmatprep.subr.mxu0 0.0
    %652 = vmatpush2.msra.mxu0 0.0
    %653 = vmatprep.subr.mxu0 0.0
    %654 = vmatpush2.msra.mxu0 0.0
    %655 = vmatprep.subr.mxu0 0.0
    %656 = vmatpush2.msra.mxu0 0.0
    %657 = vmatprep.subr.mxu0 0.0
    %658 = vmatpush2.msra.mxu0 0.0
    %659 = vmatprep.subr.mxu0 0.0
    %660 = vmatpush2.msra.mxu0 0.0
    %661 = vmatprep.subr.mxu0 0.0
    %662 = vmatpush2.msra.mxu0 0.0
    %663 = vmatprep.subr.mxu0 0.0
    %664 = vmatpush2.msra.mxu0 0.0
    %665 = vmatprep.subr.mxu0 0.0
    %666 = vmatpush2.msra.mxu0 0.0
    %667 = vmatprep.subr.mxu0 0.0
    %668 = vmatpush2.msra.mxu0 0.0
    %669 = vmatprep.subr.mxu0 0.0
    %670 = vmatpush2.msra.mxu0 0.0
    %671 = vmatprep.subr.mxu0 0.0
    %672 = vmatpush2.msra.mxu0 0.0
    %673 = vmatprep.subr.mxu0 0.0
    %674 = vmatpush2.msra.mxu0 0.0
    %675 = vmatprep.subr.mxu0 0.0
    %676 = vmatpush2.msra.mxu0 0.0
    %677 = vmatprep.subr.mxu0 0.0
    %678 = vmatpush2.msra.mxu0 0.0
    %679 = vmatprep.mubr.f32.mxu0 0.0
    %680 = vmatmul.mubr.f32.gmra.mxu0 %v361
    %v681 = vpop.f32.mrf.mxu0
    %v682 = vadd.f32 0.0, %v681
    %v683 = vpop.f32.mrf.mxu0
    %v684 = vadd.f32 0.0, %v683
    %685 = vmatprep.mubr.f32.mxu0 0.0
    %686 = vmatmul.mubr.f32.gmra.mxu0 %v366
    %v687 = vpop.f32.mrf.mxu0
    %v688 = vadd.f32 0.0, %v687
    %v689 = vpop.f32.mrf.mxu0
    %v690 = vadd.f32 0.0, %v689
    %691 = vmatprep.mubr.f32.mxu0 0.0
    %692 = vmatmul.mubr.f32.gmra.mxu0 %v371
    %v693 = vpop.f32.mrf.mxu0
    %v694 = vadd.f32 0.0, %v693
    %v695 = vpop.f32.mrf.mxu0
    %v696 = vadd.f32 0.0, %v695
    %697 = vmatprep.mubr.f32.mxu0 0.0
    %698 = vmatmul.mubr.f32.gmra.mxu0 %v376
    %v699 = vpop.f32.mrf.mxu0
    %v700 = vadd.f32 0.0, %v699
    %v701 = vpop.f32.mrf.mxu0
    %v702 = vadd.f32 0.0, %v701
    %703 = vdwg.mxu0
    %704 = vmatprep.subr.mxu0 %v610
    %705 = vmatpush1.msra.mxu0 %v609
    %706 = vmatprep.subr.mxu0 %v602
    %707 = vmatpush1.msra.mxu0 %v601
    %708 = vmatprep.subr.mxu0 %v594
    %709 = vmatpush1.msra.mxu0 %v593
    %710 = vmatprep.subr.mxu0 %v586
    %711 = vmatpush1.msra.mxu0 %v585
    %712 = vmatprep.subr.mxu0 %v578
    %713 = vmatpush1.msra.mxu0 %v577
    %714 = vmatprep.subr.mxu0 %v570
    %715 = vmatpush1.msra.mxu0 %v569
    %716 = vmatprep.subr.mxu0 %v562
    %717 = vmatpush1.msra.mxu0 %v561
    %718 = vmatprep.subr.mxu0 %v554
    %719 = vmatpush1.msra.mxu0 %v553
    %720 = vmatprep.subr.mxu0 %v546
    %721 = vmatpush1.msra.mxu0 %v545
    %722 = vmatprep.subr.mxu0 %v538
    %723 = vmatpush1.msra.mxu0 %v537
    %724 = vmatprep.subr.mxu0 %v530
    %725 = vmatpush1.msra.mxu0 %v529
    %726 = vmatprep.subr.mxu0 %v522
    %727 = vmatpush1.msra.mxu0 %v521
    %728 = vmatprep.subr.mxu0 %v514
    %729 = vmatpush1.msra.mxu0 %v513
    %730 = vmatprep.subr.mxu0 %v506
    %731 = vmatpush1.msra.mxu0 %v505
    %732 = vmatprep.subr.mxu0 %v498
    %733 = vmatpush1.msra.mxu0 %v497
    %734 = vmatprep.subr.mxu0 %v490
    %735 = vmatpush1.msra.mxu0 %v489
    %736 = vmatprep.subr.mxu0 0.0
    %737 = vmatpush2.msra.mxu0 0.0
    %738 = vmatprep.subr.mxu0 0.0
    %739 = vmatpush2.msra.mxu0 0.0
    %740 = vmatprep.subr.mxu0 0.0
    %741 = vmatpush2.msra.mxu0 0.0
    %742 = vmatprep.subr.mxu0 0.0
    %743 = vmatpush2.msra.mxu0 0.0
    %744 = vmatprep.subr.mxu0 0.0
    %745 = vmatpush2.msra.mxu0 0.0
    %746 = vmatprep.subr.mxu0 0.0
    %747 = vmatpush2.msra.mxu0 0.0
    %748 = vmatprep.subr.mxu0 0.0
    %749 = vmatpush2.msra.mxu0 0.0
    %750 = vmatprep.subr.mxu0 0.0
    %751 = vmatpush2.msra.mxu0 0.0
    %752 = vmatprep.subr.mxu0 0.0
    %753 = vmatpush2.msra.mxu0 0.0
    %754 = vmatprep.subr.mxu0 0.0
    %755 = vmatpush2.msra.mxu0 0.0
    %756 = vmatprep.subr.mxu0 0.0
    %757 = vmatpush2.msra.mxu0 0.0
    %758 = vmatprep.subr.mxu0 0.0
    %759 = vmatpush2.msra.mxu0 0.0
    %760 = vmatprep.subr.mxu0 0.0
    %761 = vmatpush2.msra.mxu0 0.0
    %762 = vmatprep.subr.mxu0 0.0
    %763 = vmatpush2.msra.mxu0 0.0
    %764 = vmatprep.subr.mxu0 0.0
    %765 = vmatpush2.msra.mxu0 0.0
    %766 = vmatprep.subr.mxu0 0.0
    %767 = vmatpush2.msra.mxu0 0.0
    %768 = vmatprep.mubr.f32.mxu0 0.0
    %769 = vmatmul.mubr.f32.gmra.mxu0 %v361
    %v770 = vpop.f32.mrf.mxu0
    %v771 = vadd.f32 0.0, %v770
    %v772 = vpop.f32.mrf.mxu0
    %v773 = vadd.f32 0.0, %v772
    %774 = vmatprep.mubr.f32.mxu0 0.0
    %775 = vmatmul.mubr.f32.gmra.mxu0 %v366
    %v776 = vpop.f32.mrf.mxu0
    %v777 = vadd.f32 0.0, %v776
    %v778 = vpop.f32.mrf.mxu0
    %v779 = vadd.f32 0.0, %v778
    %780 = vmatprep.mubr.f32.mxu0 0.0
    %781 = vmatmul.mubr.f32.gmra.mxu0 %v371
    %v782 = vpop.f32.mrf.mxu0
    %v783 = vadd.f32 0.0, %v782
    %v784 = vpop.f32.mrf.mxu0
    %v785 = vadd.f32 0.0, %v784
    %786 = vmatprep.mubr.f32.mxu0 0.0
    %787 = vmatmul.mubr.f32.gmra.mxu0 %v376
    %v788 = vpop.f32.mrf.mxu0
    %v789 = vadd.f32 0.0, %v788
    %v790 = vpop.f32.mrf.mxu0
    %v791 = vadd.f32 0.0, %v790
    %792 = vdwg.mxu0
    %793 = vmatprep.subr.mxu0 %v612
    %794 = vmatpush1.msra.mxu0 %v611
    %795 = vmatprep.subr.mxu0 %v604
    %796 = vmatpush1.msra.mxu0 %v603
    %797 = vmatprep.subr.mxu0 %v596
    %798 = vmatpush1.msra.mxu0 %v595
    %799 = vmatprep.subr.mxu0 %v588
    %800 = vmatpush1.msra.mxu0 %v587
    %801 = vmatprep.subr.mxu0 %v580
    %802 = vmatpush1.msra.mxu0 %v579
    %803 = vmatprep.subr.mxu0 %v572
    %804 = vmatpush1.msra.mxu0 %v571
    %805 = vmatprep.subr.mxu0 %v564
    %806 = vmatpush1.msra.mxu0 %v563
    %807 = vmatprep.subr.mxu0 %v556
    %808 = vmatpush1.msra.mxu0 %v555
    %809 = vmatprep.subr.mxu0 %v548
    %810 = vmatpush1.msra.mxu0 %v547
    %811 = vmatprep.subr.mxu0 %v540
    %812 = vmatpush1.msra.mxu0 %v539
    %813 = vmatprep.subr.mxu0 %v532
    %814 = vmatpush1.msra.mxu0 %v531
    %815 = vmatprep.subr.mxu0 %v524
    %816 = vmatpush1.msra.mxu0 %v523
    %817 = vmatprep.subr.mxu0 %v516
    %818 = vmatpush1.msra.mxu0 %v515
    %819 = vmatprep.subr.mxu0 %v508
    %820 = vmatpush1.msra.mxu0 %v507
    %821 = vmatprep.subr.mxu0 %v500
    %822 = vmatpush1.msra.mxu0 %v499
    %823 = vmatprep.subr.mxu0 %v492
    %824 = vmatpush1.msra.mxu0 %v491
    %825 = vmatprep.subr.mxu0 0.0
    %826 = vmatpush2.msra.mxu0 0.0
    %827 = vmatprep.subr.mxu0 0.0
    %828 = vmatpush2.msra.mxu0 0.0
    %829 = vmatprep.subr.mxu0 0.0
    %830 = vmatpush2.msra.mxu0 0.0
    %831 = vmatprep.subr.mxu0 0.0
    %832 = vmatpush2.msra.mxu0 0.0
    %833 = vmatprep.subr.mxu0 0.0
    %834 = vmatpush2.msra.mxu0 0.0
    %835 = vmatprep.subr.mxu0 0.0
    %836 = vmatpush2.msra.mxu0 0.0
    %837 = vmatprep.subr.mxu0 0.0
    %838 = vmatpush2.msra.mxu0 0.0
    %839 = vmatprep.subr.mxu0 0.0
    %840 = vmatpush2.msra.mxu0 0.0
    %841 = vmatprep.subr.mxu0 0.0
    %842 = vmatpush2.msra.mxu0 0.0
    %843 = vmatprep.subr.mxu0 0.0
    %844 = vmatpush2.msra.mxu0 0.0
    %845 = vmatprep.subr.mxu0 0.0
    %846 = vmatpush2.msra.mxu0 0.0
    %847 = vmatprep.subr.mxu0 0.0
    %848 = vmatpush2.msra.mxu0 0.0
    %849 = vmatprep.subr.mxu0 0.0
    %850 = vmatpush2.msra.mxu0 0.0
    %851 = vmatprep.subr.mxu0 0.0
    %852 = vmatpush2.msra.mxu0 0.0
    %853 = vmatprep.subr.mxu0 0.0
    %854 = vmatpush2.msra.mxu0 0.0
    %855 = vmatprep.subr.mxu0 0.0
    %856 = vmatpush2.msra.mxu0 0.0
    %857 = vmatprep.mubr.f32.mxu0 0.0
    %858 = vmatmul.mubr.f32.gmra.mxu0 %v361
    %v859 = vpop.f32.mrf.mxu0
    %v860 = vadd.f32 0.0, %v859
    %v861 = vpop.f32.mrf.mxu0
    %v862 = vadd.f32 0.0, %v861
    %863 = vmatprep.mubr.f32.mxu0 0.0
    %864 = vmatmul.mubr.f32.gmra.mxu0 %v366
    %v865 = vpop.f32.mrf.mxu0
    %v866 = vadd.f32 0.0, %v865
    %v867 = vpop.f32.mrf.mxu0
    %v868 = vadd.f32 0.0, %v867
    %869 = vmatprep.mubr.f32.mxu0 0.0
    %870 = vmatmul.mubr.f32.gmra.mxu0 %v371
    %v871 = vpop.f32.mrf.mxu0
    %v872 = vadd.f32 0.0, %v871
    %v873 = vpop.f32.mrf.mxu0
    %v874 = vadd.f32 0.0, %v873
    %875 = vmatprep.mubr.f32.mxu0 0.0
    %876 = vmatmul.mubr.f32.gmra.mxu0 %v376
    %v877 = vpop.f32.mrf.mxu0
    %v878 = vadd.f32 0.0, %v877
    %v879 = vpop.f32.mrf.mxu0
    %v880 = vadd.f32 0.0, %v879
    %881 = vdwg.mxu0
    %882 = vmatprep.subr.mxu0 %v614
    %883 = vmatpush1.msra.mxu0 %v613
    %884 = vmatprep.subr.mxu0 %v606
    %885 = vmatpush1.msra.mxu0 %v605
    %886 = vmatprep.subr.mxu0 %v598
    %887 = vmatpush1.msra.mxu0 %v597
    %888 = vmatprep.subr.mxu0 %v590
    %889 = vmatpush1.msra.mxu0 %v589
    %890 = vmatprep.subr.mxu0 %v582
    %891 = vmatpush1.msra.mxu0 %v581
    %892 = vmatprep.subr.mxu0 %v574
    %893 = vmatpush1.msra.mxu0 %v573
    %894 = vmatprep.subr.mxu0 %v566
    %895 = vmatpush1.msra.mxu0 %v565
    %896 = vmatprep.subr.mxu0 %v558
    %897 = vmatpush1.msra.mxu0 %v557
    %898 = vmatprep.subr.mxu0 %v550
    %899 = vmatpush1.msra.mxu0 %v549
    %900 = vmatprep.subr.mxu0 %v542
    %901 = vmatpush1.msra.mxu0 %v541
    %902 = vmatprep.subr.mxu0 %v534
    %903 = vmatpush1.msra.mxu0 %v533
    %904 = vmatprep.subr.mxu0 %v526
    %905 = vmatpush1.msra.mxu0 %v525
    %906 = vmatprep.subr.mxu0 %v518
    %907 = vmatpush1.msra.mxu0 %v517
    %908 = vmatprep.subr.mxu0 %v510
    %909 = vmatpush1.msra.mxu0 %v509
    %910 = vmatprep.subr.mxu0 %v502
    %911 = vmatpush1.msra.mxu0 %v501
    %912 = vmatprep.subr.mxu0 %v494
    %913 = vmatpush1.msra.mxu0 %v493
    %914 = vmatprep.subr.mxu0 0.0
    %915 = vmatpush2.msra.mxu0 0.0
    %916 = vmatprep.subr.mxu0 0.0
    %917 = vmatpush2.msra.mxu0 0.0
    %918 = vmatprep.subr.mxu0 0.0
    %919 = vmatpush2.msra.mxu0 0.0
    %920 = vmatprep.subr.mxu0 0.0
    %921 = vmatpush2.msra.mxu0 0.0
    %922 = vmatprep.subr.mxu0 0.0
    %923 = vmatpush2.msra.mxu0 0.0
    %924 = vmatprep.subr.mxu0 0.0
    %925 = vmatpush2.msra.mxu0 0.0
    %926 = vmatprep.subr.mxu0 0.0
    %927 = vmatpush2.msra.mxu0 0.0
    %928 = vmatprep.subr.mxu0 0.0
    %929 = vmatpush2.msra.mxu0 0.0
    %930 = vmatprep.subr.mxu0 0.0
    %931 = vmatpush2.msra.mxu0 0.0
    %932 = vmatprep.subr.mxu0 0.0
    %933 = vmatpush2.msra.mxu0 0.0
    %934 = vmatprep.subr.mxu0 0.0
    %935 = vmatpush2.msra.mxu0 0.0
    %936 = vmatprep.subr.mxu0 0.0
    %937 = vmatpush2.msra.mxu0 0.0
    %938 = vmatprep.subr.mxu0 0.0
    %939 = vmatpush2.msra.mxu0 0.0
    %940 = vmatprep.subr.mxu0 0.0
    %941 = vmatpush2.msra.mxu0 0.0
    %942 = vmatprep.subr.mxu0 0.0
    %943 = vmatpush2.msra.mxu0 0.0
    %944 = vmatprep.subr.mxu0 0.0
    %945 = vmatpush2.msra.mxu0 0.0
    %946 = vmatprep.mubr.f32.mxu0 0.0
    %947 = vmatmul.mubr.f32.gmra.mxu0 %v361
    %v948 = vpop.f32.mrf.mxu0
    %v949 = vadd.f32 0.0, %v948
    %v950 = vpop.f32.mrf.mxu0
    %v951 = vadd.f32 0.0, %v950
    %952 = vmatprep.mubr.f32.mxu0 0.0
    %953 = vmatmul.mubr.f32.gmra.mxu0 %v366
    %v954 = vpop.f32.mrf.mxu0
    %v955 = vadd.f32 0.0, %v954
    %v956 = vpop.f32.mrf.mxu0
    %v957 = vadd.f32 0.0, %v956
    %958 = vmatprep.mubr.f32.mxu0 0.0
    %959 = vmatmul.mubr.f32.gmra.mxu0 %v371
    %v960 = vpop.f32.mrf.mxu0
    %v961 = vadd.f32 0.0, %v960
    %v962 = vpop.f32.mrf.mxu0
    %v963 = vadd.f32 0.0, %v962
    %964 = vmatprep.mubr.f32.mxu0 0.0
    %965 = vmatmul.mubr.f32.gmra.mxu0 %v376
    %v966 = vpop.f32.mrf.mxu0
    %v967 = vadd.f32 0.0, %v966
    %v968 = vpop.f32.mrf.mxu0
    %v969 = vadd.f32 0.0, %v968
    %970 = vdwg.mxu0
    %971 = vmatprep.subr.mxu0 %v608
    %972 = vmatpush1.msra.mxu0 %v607
    %973 = vmatprep.subr.mxu0 %v600
    %974 = vmatpush1.msra.mxu0 %v599
    %975 = vmatprep.subr.mxu0 %v592
    %976 = vmatpush1.msra.mxu0 %v591
    %977 = vmatprep.subr.mxu0 %v584
    %978 = vmatpush1.msra.mxu0 %v583
    %979 = vmatprep.subr.mxu0 %v576
    %980 = vmatpush1.msra.mxu0 %v575
    %981 = vmatprep.subr.mxu0 %v568
    %982 = vmatpush1.msra.mxu0 %v567
    %983 = vmatprep.subr.mxu0 %v560
    %984 = vmatpush1.msra.mxu0 %v559
    %985 = vmatprep.subr.mxu0 %v552
    %986 = vmatpush1.msra.mxu0 %v551
    %987 = vmatprep.subr.mxu0 %v544
    %988 = vmatpush1.msra.mxu0 %v543
    %989 = vmatprep.subr.mxu0 %v536
    %990 = vmatpush1.msra.mxu0 %v535
    %991 = vmatprep.subr.mxu0 %v528
    %992 = vmatpush1.msra.mxu0 %v527
    %993 = vmatprep.subr.mxu0 %v520
    %994 = vmatpush1.msra.mxu0 %v519
    %995 = vmatprep.subr.mxu0 %v512
    %996 = vmatpush1.msra.mxu0 %v511
    %997 = vmatprep.subr.mxu0 %v504
    %998 = vmatpush1.msra.mxu0 %v503
    %999 = vmatprep.subr.mxu0 %v496
    %1000 = vmatpush1.msra.mxu0 %v495
    %1001 = vmatprep.subr.mxu0 %v488
    %1002 = vmatpush1.msra.mxu0 %v487
    %1003 = vmatprep.subr.mxu0 0.0
    %1004 = vmatpush2.msra.mxu0 0.0
    %1005 = vmatprep.subr.mxu0 0.0
    %1006 = vmatpush2.msra.mxu0 0.0
    %1007 = vmatprep.subr.mxu0 0.0
    %1008 = vmatpush2.msra.mxu0 0.0
    %1009 = vmatprep.subr.mxu0 0.0
    %1010 = vmatpush2.msra.mxu0 0.0
    %1011 = vmatprep.subr.mxu0 0.0
    %1012 = vmatpush2.msra.mxu0 0.0
    %1013 = vmatprep.subr.mxu0 0.0
    %1014 = vmatpush2.msra.mxu0 0.0
    %1015 = vmatprep.subr.mxu0 0.0
    %1016 = vmatpush2.msra.mxu0 0.0
    %1017 = vmatprep.subr.mxu0 0.0
    %1018 = vmatpush2.msra.mxu0 0.0
    %1019 = vmatprep.subr.mxu0 0.0
    %1020 = vmatpush2.msra.mxu0 0.0
    %1021 = vmatprep.subr.mxu0 0.0
    %1022 = vmatpush2.msra.mxu0 0.0
    %1023 = vmatprep.subr.mxu0 0.0
    %1024 = vmatpush2.msra.mxu0 0.0
    %1025 = vmatprep.subr.mxu0 0.0
    %1026 = vmatpush2.msra.mxu0 0.0
    %1027 = vmatprep.subr.mxu0 0.0
    %1028 = vmatpush2.msra.mxu0 0.0
    %1029 = vmatprep.subr.mxu0 0.0
    %1030 = vmatpush2.msra.mxu0 0.0
    %1031 = vmatprep.subr.mxu0 0.0
    %1032 = vmatpush2.msra.mxu0 0.0
    %1033 = vmatprep.subr.mxu0 0.0
    %1034 = vmatpush2.msra.mxu0 0.0
    %1035 = vmatprep.mubr.f32.mxu0 0.0
    %1036 = vmatmul.mubr.f32.gmra.mxu0 %v469
    %v1037 = vpop.f32.mrf.mxu0
    %v1038 = vadd.f32 0.0, %v1037
    %v1039 = vpop.f32.mrf.mxu0
    %v1040 = vadd.f32 0.0, %v1039
    %1041 = vmatprep.mubr.f32.mxu0 0.0
    %1042 = vmatmul.mubr.f32.gmra.mxu0 %v474
    %v1043 = vpop.f32.mrf.mxu0
    %v1044 = vadd.f32 0.0, %v1043
    %v1045 = vpop.f32.mrf.mxu0
    %v1046 = vadd.f32 0.0, %v1045
    %1047 = vmatprep.mubr.f32.mxu0 0.0
    %1048 = vmatmul.mubr.f32.gmra.mxu0 %v479
    %v1049 = vpop.f32.mrf.mxu0
    %v1050 = vadd.f32 0.0, %v1049
    %v1051 = vpop.f32.mrf.mxu0
    %v1052 = vadd.f32 0.0, %v1051
    %1053 = vmatprep.mubr.f32.mxu0 0.0
    %1054 = vmatmul.mubr.f32.gmra.mxu0 %v484
    %v1055 = vpop.f32.mrf.mxu0
    %v1056 = vadd.f32 0.0, %v1055
    %v1057 = vpop.f32.mrf.mxu0
    %v1058 = vadd.f32 0.0, %v1057
    %1059 = vdwg.mxu0
    %1060 = vmatprep.subr.mxu0 %v610
    %1061 = vmatpush1.msra.mxu0 %v609
    %1062 = vmatprep.subr.mxu0 %v602
    %1063 = vmatpush1.msra.mxu0 %v601
    %1064 = vmatprep.subr.mxu0 %v594
    %1065 = vmatpush1.msra.mxu0 %v593
    %1066 = vmatprep.subr.mxu0 %v586
    %1067 = vmatpush1.msra.mxu0 %v585
    %1068 = vmatprep.subr.mxu0 %v578
    %1069 = vmatpush1.msra.mxu0 %v577
    %1070 = vmatprep.subr.mxu0 %v570
    %1071 = vmatpush1.msra.mxu0 %v569
    %1072 = vmatprep.subr.mxu0 %v562
    %1073 = vmatpush1.msra.mxu0 %v561
    %1074 = vmatprep.subr.mxu0 %v554
    %1075 = vmatpush1.msra.mxu0 %v553
    %1076 = vmatprep.subr.mxu0 %v546
    %1077 = vmatpush1.msra.mxu0 %v545
    %1078 = vmatprep.subr.mxu0 %v538
    %1079 = vmatpush1.msra.mxu0 %v537
    %1080 = vmatprep.subr.mxu0 %v530
    %1081 = vmatpush1.msra.mxu0 %v529
    %1082 = vmatprep.subr.mxu0 %v522
    %1083 = vmatpush1.msra.mxu0 %v521
    %1084 = vmatprep.subr.mxu0 %v514
    %1085 = vmatpush1.msra.mxu0 %v513
    %1086 = vmatprep.subr.mxu0 %v506
    %1087 = vmatpush1.msra.mxu0 %v505
    %1088 = vmatprep.subr.mxu0 %v498
    %1089 = vmatpush1.msra.mxu0 %v497
    %1090 = vmatprep.subr.mxu0 %v490
    %1091 = vmatpush1.msra.mxu0 %v489
    %1092 = vmatprep.subr.mxu0 0.0
    %1093 = vmatpush2.msra.mxu0 0.0
    %1094 = vmatprep.subr.mxu0 0.0
    %1095 = vmatpush2.msra.mxu0 0.0
    %1096 = vmatprep.subr.mxu0 0.0
    %1097 = vmatpush2.msra.mxu0 0.0
    %1098 = vmatprep.subr.mxu0 0.0
    %1099 = vmatpush2.msra.mxu0 0.0
    %1100 = vmatprep.subr.mxu0 0.0
    %1101 = vmatpush2.msra.mxu0 0.0
    %1102 = vmatprep.subr.mxu0 0.0
    %1103 = vmatpush2.msra.mxu0 0.0
    %1104 = vmatprep.subr.mxu0 0.0
    %1105 = vmatpush2.msra.mxu0 0.0
    %1106 = vmatprep.subr.mxu0 0.0
    %1107 = vmatpush2.msra.mxu0 0.0
    %1108 = vmatprep.subr.mxu0 0.0
    %1109 = vmatpush2.msra.mxu0 0.0
    %1110 = vmatprep.subr.mxu0 0.0
    %1111 = vmatpush2.msra.mxu0 0.0
    %1112 = vmatprep.subr.mxu0 0.0
    %1113 = vmatpush2.msra.mxu0 0.0
    %1114 = vmatprep.subr.mxu0 0.0
    %1115 = vmatpush2.msra.mxu0 0.0
    %1116 = vmatprep.subr.mxu0 0.0
    %1117 = vmatpush2.msra.mxu0 0.0
    %1118 = vmatprep.subr.mxu0 0.0
    %1119 = vmatpush2.msra.mxu0 0.0
    %1120 = vmatprep.subr.mxu0 0.0
    %1121 = vmatpush2.msra.mxu0 0.0
    %1122 = vmatprep.subr.mxu0 0.0
    %1123 = vmatpush2.msra.mxu0 0.0
    %1124 = vmatprep.mubr.f32.mxu0 0.0
    %1125 = vmatmul.mubr.f32.gmra.mxu0 %v469
    %v1126 = vpop.f32.mrf.mxu0
    %v1127 = vadd.f32 0.0, %v1126
    %v1128 = vpop.f32.mrf.mxu0
    %v1129 = vadd.f32 0.0, %v1128
    %1130 = vmatprep.mubr.f32.mxu0 0.0
    %1131 = vmatmul.mubr.f32.gmra.mxu0 %v474
    %v1132 = vpop.f32.mrf.mxu0
    %v1133 = vadd.f32 0.0, %v1132
    %v1134 = vpop.f32.mrf.mxu0
    %v1135 = vadd.f32 0.0, %v1134
    %1136 = vmatprep.mubr.f32.mxu0 0.0
    %1137 = vmatmul.mubr.f32.gmra.mxu0 %v479
    %v1138 = vpop.f32.mrf.mxu0
    %v1139 = vadd.f32 0.0, %v1138
    %v1140 = vpop.f32.mrf.mxu0
    %v1141 = vadd.f32 0.0, %v1140
    %1142 = vmatprep.mubr.f32.mxu0 0.0
    %1143 = vmatmul.mubr.f32.gmra.mxu0 %v484
    %v1144 = vpop.f32.mrf.mxu0
    %v1145 = vadd.f32 0.0, %v1144
    %v1146 = vpop.f32.mrf.mxu0
    %v1147 = vadd.f32 0.0, %v1146
    %1148 = vdwg.mxu0
    %1149 = vmatprep.subr.mxu0 %v612
    %1150 = vmatpush1.msra.mxu0 %v611
    %1151 = vmatprep.subr.mxu0 %v604
    %1152 = vmatpush1.msra.mxu0 %v603
    %1153 = vmatprep.subr.mxu0 %v596
    %1154 = vmatpush1.msra.mxu0 %v595
    %1155 = vmatprep.subr.mxu0 %v588
    %1156 = vmatpush1.msra.mxu0 %v587
    %1157 = vmatprep.subr.mxu0 %v580
    %1158 = vmatpush1.msra.mxu0 %v579
    %1159 = vmatprep.subr.mxu0 %v572
    %1160 = vmatpush1.msra.mxu0 %v571
    %1161 = vmatprep.subr.mxu0 %v564
    %1162 = vmatpush1.msra.mxu0 %v563
    %1163 = vmatprep.subr.mxu0 %v556
    %1164 = vmatpush1.msra.mxu0 %v555
    %1165 = vmatprep.subr.mxu0 %v548
    %1166 = vmatpush1.msra.mxu0 %v547
    %1167 = vmatprep.subr.mxu0 %v540
    %1168 = vmatpush1.msra.mxu0 %v539
    %1169 = vmatprep.subr.mxu0 %v532
    %1170 = vmatpush1.msra.mxu0 %v531
    %1171 = vmatprep.subr.mxu0 %v524
    %1172 = vmatpush1.msra.mxu0 %v523
    %1173 = vmatprep.subr.mxu0 %v516
    %1174 = vmatpush1.msra.mxu0 %v515
    %1175 = vmatprep.subr.mxu0 %v508
    %1176 = vmatpush1.msra.mxu0 %v507
    %1177 = vmatprep.subr.mxu0 %v500
    %1178 = vmatpush1.msra.mxu0 %v499
    %1179 = vmatprep.subr.mxu0 %v492
    %1180 = vmatpush1.msra.mxu0 %v491
    %1181 = vmatprep.subr.mxu0 0.0
    %1182 = vmatpush2.msra.mxu0 0.0
    %1183 = vmatprep.subr.mxu0 0.0
    %1184 = vmatpush2.msra.mxu0 0.0
    %1185 = vmatprep.subr.mxu0 0.0
    %1186 = vmatpush2.msra.mxu0 0.0
    %1187 = vmatprep.subr.mxu0 0.0
    %1188 = vmatpush2.msra.mxu0 0.0
    %1189 = vmatprep.subr.mxu0 0.0
    %1190 = vmatpush2.msra.mxu0 0.0
    %1191 = vmatprep.subr.mxu0 0.0
    %1192 = vmatpush2.msra.mxu0 0.0
    %1193 = vmatprep.subr.mxu0 0.0
    %1194 = vmatpush2.msra.mxu0 0.0
    %1195 = vmatprep.subr.mxu0 0.0
    %1196 = vmatpush2.msra.mxu0 0.0
    %1197 = vmatprep.subr.mxu0 0.0
    %1198 = vmatpush2.msra.mxu0 0.0
    %1199 = vmatprep.subr.mxu0 0.0
    %1200 = vmatpush2.msra.mxu0 0.0
    %1201 = vmatprep.subr.mxu0 0.0
    %1202 = vmatpush2.msra.mxu0 0.0
    %1203 = vmatprep.subr.mxu0 0.0
    %1204 = vmatpush2.msra.mxu0 0.0
    %1205 = vmatprep.subr.mxu0 0.0
    %1206 = vmatpush2.msra.mxu0 0.0
    %1207 = vmatprep.subr.mxu0 0.0
    %1208 = vmatpush2.msra.mxu0 0.0
    %1209 = vmatprep.subr.mxu0 0.0
    %1210 = vmatpush2.msra.mxu0 0.0
    %1211 = vmatprep.subr.mxu0 0.0
    %1212 = vmatpush2.msra.mxu0 0.0
    %1213 = vmatprep.mubr.f32.mxu0 0.0
    %1214 = vmatmul.mubr.f32.gmra.mxu0 %v469
    %v1215 = vpop.f32.mrf.mxu0
    %v1216 = vadd.f32 0.0, %v1215
    %v1217 = vpop.f32.mrf.mxu0
    %v1218 = vadd.f32 0.0, %v1217
    %1219 = vmatprep.mubr.f32.mxu0 0.0
    %1220 = vmatmul.mubr.f32.gmra.mxu0 %v474
    %v1221 = vpop.f32.mrf.mxu0
    %v1222 = vadd.f32 0.0, %v1221
    %v1223 = vpop.f32.mrf.mxu0
    %v1224 = vadd.f32 0.0, %v1223
    %1225 = vmatprep.mubr.f32.mxu0 0.0
    %1226 = vmatmul.mubr.f32.gmra.mxu0 %v479
    %v1227 = vpop.f32.mrf.mxu0
    %v1228 = vadd.f32 0.0, %v1227
    %v1229 = vpop.f32.mrf.mxu0
    %v1230 = vadd.f32 0.0, %v1229
    %1231 = vmatprep.mubr.f32.mxu0 0.0
    %1232 = vmatmul.mubr.f32.gmra.mxu0 %v484
    %v1233 = vpop.f32.mrf.mxu0
    %v1234 = vadd.f32 0.0, %v1233
    %v1235 = vpop.f32.mrf.mxu0
    %v1236 = vadd.f32 0.0, %v1235
    %1237 = vdwg.mxu0
    %1238 = vmatprep.subr.mxu0 %v614
    %1239 = vmatpush1.msra.mxu0 %v613
    %1240 = vmatprep.subr.mxu0 %v606
    %1241 = vmatpush1.msra.mxu0 %v605
    %1242 = vmatprep.subr.mxu0 %v598
    %1243 = vmatpush1.msra.mxu0 %v597
    %1244 = vmatprep.subr.mxu0 %v590
    %1245 = vmatpush1.msra.mxu0 %v589
    %1246 = vmatprep.subr.mxu0 %v582
    %1247 = vmatpush1.msra.mxu0 %v581
    %1248 = vmatprep.subr.mxu0 %v574
    %1249 = vmatpush1.msra.mxu0 %v573
    %1250 = vmatprep.subr.mxu0 %v566
    %1251 = vmatpush1.msra.mxu0 %v565
    %1252 = vmatprep.subr.mxu0 %v558
    %1253 = vmatpush1.msra.mxu0 %v557
    %1254 = vmatprep.subr.mxu0 %v550
    %1255 = vmatpush1.msra.mxu0 %v549
    %1256 = vmatprep.subr.mxu0 %v542
    %1257 = vmatpush1.msra.mxu0 %v541
    %1258 = vmatprep.subr.mxu0 %v534
    %1259 = vmatpush1.msra.mxu0 %v533
    %1260 = vmatprep.subr.mxu0 %v526
    %1261 = vmatpush1.msra.mxu0 %v525
    %1262 = vmatprep.subr.mxu0 %v518
    %1263 = vmatpush1.msra.mxu0 %v517
    %1264 = vmatprep.subr.mxu0 %v510
    %1265 = vmatpush1.msra.mxu0 %v509
    %1266 = vmatprep.subr.mxu0 %v502
    %1267 = vmatpush1.msra.mxu0 %v501
    %1268 = vmatprep.subr.mxu0 %v494
    %1269 = vmatpush1.msra.mxu0 %v493
    %1270 = vmatprep.subr.mxu0 0.0
    %1271 = vmatpush2.msra.mxu0 0.0
    %1272 = vmatprep.subr.mxu0 0.0
    %1273 = vmatpush2.msra.mxu0 0.0
    %1274 = vmatprep.subr.mxu0 0.0
    %1275 = vmatpush2.msra.mxu0 0.0
    %1276 = vmatprep.subr.mxu0 0.0
    %1277 = vmatpush2.msra.mxu0 0.0
    %1278 = vmatprep.subr.mxu0 0.0
    %1279 = vmatpush2.msra.mxu0 0.0
    %1280 = vmatprep.subr.mxu0 0.0
    %1281 = vmatpush2.msra.mxu0 0.0
    %1282 = vmatprep.subr.mxu0 0.0
    %1283 = vmatpush2.msra.mxu0 0.0
    %1284 = vmatprep.subr.mxu0 0.0
    %1285 = vmatpush2.msra.mxu0 0.0
    %1286 = vmatprep.subr.mxu0 0.0
    %1287 = vmatpush2.msra.mxu0 0.0
    %1288 = vmatprep.subr.mxu0 0.0
    %1289 = vmatpush2.msra.mxu0 0.0
    %1290 = vmatprep.subr.mxu0 0.0
    %1291 = vmatpush2.msra.mxu0 0.0
    %1292 = vmatprep.subr.mxu0 0.0
    %1293 = vmatpush2.msra.mxu0 0.0
    %1294 = vmatprep.subr.mxu0 0.0
    %1295 = vmatpush2.msra.mxu0 0.0
    %1296 = vmatprep.subr.mxu0 0.0
    %1297 = vmatpush2.msra.mxu0 0.0
    %1298 = vmatprep.subr.mxu0 0.0
    %1299 = vmatpush2.msra.mxu0 0.0
    %1300 = vmatprep.subr.mxu0 0.0
    %1301 = vmatpush2.msra.mxu0 0.0
    %1302 = vmatprep.mubr.f32.mxu0 0.0
    %1303 = vmatmul.mubr.f32.gmra.mxu0 %v469
    %v1304 = vpop.f32.mrf.mxu0
    %v1305 = vadd.f32 0.0, %v1304
    %v1306 = vpop.f32.mrf.mxu0
    %v1307 = vadd.f32 0.0, %v1306
    %1308 = vmatprep.mubr.f32.mxu0 0.0
    %1309 = vmatmul.mubr.f32.gmra.mxu0 %v474
    %v1310 = vpop.f32.mrf.mxu0
    %v1311 = vadd.f32 0.0, %v1310
    %v1312 = vpop.f32.mrf.mxu0
    %v1313 = vadd.f32 0.0, %v1312
    %1314 = vmatprep.mubr.f32.mxu0 0.0
    %1315 = vmatmul.mubr.f32.gmra.mxu0 %v479
    %v1316 = vpop.f32.mrf.mxu0
    %v1317 = vadd.f32 0.0, %v1316
    %v1318 = vpop.f32.mrf.mxu0
    %v1319 = vadd.f32 0.0, %v1318
    %1320 = vmatprep.mubr.f32.mxu0 0.0
    %1321 = vmatmul.mubr.f32.gmra.mxu0 %v484
    %v1322 = vpop.f32.mrf.mxu0
    %v1323 = vadd.f32 0.0, %v1322
    %v1324 = vpop.f32.mrf.mxu0
    %v1325 = vadd.f32 0.0, %v1324
    %1326 = vdwg.mxu0
    %v1327 = vmul.f32 %v253, 0.35355338
    %v1328 = vmul.f32 %v258, 0.35355338
    %v1329 = vmul.f32 %v263, 0.35355338
    %v1330 = vmul.f32 %v268, 0.35355338
    %v1331 = vmul.f32 %v1327, %v682
    %v1332 = vmul.f32 %v1328, %v688
    %v1333 = vmul.f32 %v1329, %v694
    %v1334 = vmul.f32 %v1330, %v700
    %v1335 = vmul.f32 %v1327, %v684
    %v1336 = vmul.f32 %v1328, %v690
    %v1337 = vmul.f32 %v1329, %v696
    %v1338 = vmul.f32 %v1330, %v702
    %v1339 = vmul.f32 %v1327, %v771
    %v1340 = vmul.f32 %v1328, %v777
    %v1341 = vmul.f32 %v1329, %v783
    %v1342 = vmul.f32 %v1330, %v789
    %v1343 = vmul.f32 %v1327, %v773
    %v1344 = vmul.f32 %v1328, %v779
    %v1345 = vmul.f32 %v1329, %v785
    %v1346 = vmul.f32 %v1330, %v791
    %v1347 = vmul.f32 %v1327, %v860
    %v1348 = vmul.f32 %v1328, %v866
    %v1349 = vmul.f32 %v1329, %v872
    %v1350 = vmul.f32 %v1330, %v878
    %v1351 = vmul.f32 %v1327, %v862
    %v1352 = vmul.f32 %v1328, %v868
    %v1353 = vmul.f32 %v1329, %v874
    %v1354 = vmul.f32 %v1330, %v880
    %v1355 = vmul.f32 %v1327, %v949
    %v1356 = vmul.f32 %v1328, %v955
    %v1357 = vmul.f32 %v1329, %v961
    %v1358 = vmul.f32 %v1330, %v967
    %v1359 = vmul.f32 %v1327, %v951
    %v1360 = vmul.f32 %v1328, %v957
    %v1361 = vmul.f32 %v1329, %v963
    %v1362 = vmul.f32 %v1330, %v969
    %v1363 = vmax.f32 %v1331, %v1335
    %v1364 = vmax.f32 %v1332, %v1336
    %v1365 = vmax.f32 %v1333, %v1337
    %v1366 = vmax.f32 %v1334, %v1338
    %v1367 = vmax.f32 %v1363, %v1339
    %v1368 = vmax.f32 %v1364, %v1340
    %v1369 = vmax.f32 %v1365, %v1341
    %v1370 = vmax.f32 %v1366, %v1342
    %v1371 = vmax.f32 %v1367, %v1343
    %v1372 = vmax.f32 %v1368, %v1344
    %v1373 = vmax.f32 %v1369, %v1345
    %v1374 = vmax.f32 %v1370, %v1346
    %v1375 = vmax.f32 %v1371, %v1347
    %v1376 = vmax.f32 %v1372, %v1348
    %v1377 = vmax.f32 %v1373, %v1349
    %v1378 = vmax.f32 %v1374, %v1350
    %v1379 = vmax.f32 %v1375, %v1351
    %v1380 = vmax.f32 %v1376, %v1352
    %v1381 = vmax.f32 %v1377, %v1353
    %v1382 = vmax.f32 %v1378, %v1354
    %v1383 = vmax.f32 %v1379, %v1355
    %v1384 = vmax.f32 %v1380, %v1356
    %v1385 = vmax.f32 %v1381, %v1357
    %v1386 = vmax.f32 %v1382, %v1358
    %v1387 = vmax.f32 %v1383, %v1359
    %v1388 = vmax.f32 %v1384, %v1360
    %v1389 = vmax.f32 %v1385, %v1361
    %v1390 = vmax.f32 %v1386, %v1362
    %v1391 = vsub.f32 %v1331, %v1387
    %v1392 = vsub.f32 %v1332, %v1388
    %v1393 = vsub.f32 %v1333, %v1389
    %v1394 = vsub.f32 %v1334, %v1390
    %v1395 = vmul.f32 %v1391, 1.442695
    %v1396 = vpow.pop %v1395
    %v1397 = vmul.f32 %v1392, 1.442695
    %v1398 = vpow.pop %v1397
    %v1399 = vmul.f32 %v1393, 1.442695
    %v1400 = vpow.pop %v1399
    %v1401 = vmul.f32 %v1394, 1.442695
    %v1402 = vpow.pop %v1401
    %v1403 = vadd.f32 %v1396, 0.0
    %v1404 = vadd.f32 %v1398, 0.0
    %v1405 = vadd.f32 %v1400, 0.0
    %v1406 = vadd.f32 %v1402, 0.0
    %v1407 = vmul.f32 %v1396, %v1038
    %v1408 = vmul.f32 %v1398, %v1044
    %v1409 = vmul.f32 %v1400, %v1050
    %v1410 = vmul.f32 %v1402, %v1056
    %v1411 = vadd.f32 %v1407, 0.0
    %v1412 = vadd.f32 %v1408, 0.0
    %v1413 = vadd.f32 %v1409, 0.0
    %v1414 = vadd.f32 %v1410, 0.0
    %v1415 = vsub.f32 %v1335, %v1387
    %v1416 = vsub.f32 %v1336, %v1388
    %v1417 = vsub.f32 %v1337, %v1389
    %v1418 = vsub.f32 %v1338, %v1390
    %v1419 = vmul.f32 %v1415, 1.442695
    %v1420 = vpow.pop %v1419
    %v1421 = vmul.f32 %v1416, 1.442695
    %v1422 = vpow.pop %v1421
    %v1423 = vmul.f32 %v1417, 1.442695
    %v1424 = vpow.pop %v1423
    %v1425 = vmul.f32 %v1418, 1.442695
    %v1426 = vpow.pop %v1425
    %v1427 = vadd.f32 %v1403, %v1420
    %v1428 = vadd.f32 %v1404, %v1422
    %v1429 = vadd.f32 %v1405, %v1424
    %v1430 = vadd.f32 %v1406, %v1426
    %v1431 = vmul.f32 %v1420, %v1040
    %v1432 = vmul.f32 %v1422, %v1046
    %v1433 = vmul.f32 %v1424, %v1052
    %v1434 = vmul.f32 %v1426, %v1058
    %v1435 = vadd.f32 %v1411, %v1431
    %v1436 = vadd.f32 %v1412, %v1432
    %v1437 = vadd.f32 %v1413, %v1433
    %v1438 = vadd.f32 %v1414, %v1434
    %v1439 = vsub.f32 %v1339, %v1387
    %v1440 = vsub.f32 %v1340, %v1388
    %v1441 = vsub.f32 %v1341, %v1389
    %v1442 = vsub.f32 %v1342, %v1390
    %v1443 = vmul.f32 %v1439, 1.442695
    %v1444 = vpow.pop %v1443
    %v1445 = vmul.f32 %v1440, 1.442695
    %v1446 = vpow.pop %v1445
    %v1447 = vmul.f32 %v1441, 1.442695
    %v1448 = vpow.pop %v1447
    %v1449 = vmul.f32 %v1442, 1.442695
    %v1450 = vpow.pop %v1449
    %v1451 = vadd.f32 %v1427, %v1444
    %v1452 = vadd.f32 %v1428, %v1446
    %v1453 = vadd.f32 %v1429, %v1448
    %v1454 = vadd.f32 %v1430, %v1450
    %v1455 = vmul.f32 %v1444, %v1127
    %v1456 = vmul.f32 %v1446, %v1133
    %v1457 = vmul.f32 %v1448, %v1139
    %v1458 = vmul.f32 %v1450, %v1145
    %v1459 = vadd.f32 %v1435, %v1455
    %v1460 = vadd.f32 %v1436, %v1456
    %v1461 = vadd.f32 %v1437, %v1457
    %v1462 = vadd.f32 %v1438, %v1458
    %v1463 = vsub.f32 %v1343, %v1387
    %v1464 = vsub.f32 %v1344, %v1388
    %v1465 = vsub.f32 %v1345, %v1389
    %v1466 = vsub.f32 %v1346, %v1390
    %v1467 = vmul.f32 %v1463, 1.442695
    %v1468 = vpow.pop %v1467
    %v1469 = vmul.f32 %v1464, 1.442695
    %v1470 = vpow.pop %v1469
    %v1471 = vmul.f32 %v1465, 1.442695
    %v1472 = vpow.pop %v1471
    %v1473 = vmul.f32 %v1466, 1.442695
    %v1474 = vpow.pop %v1473
    %v1475 = vadd.f32 %v1451, %v1468
    %v1476 = vadd.f32 %v1452, %v1470
    %v1477 = vadd.f32 %v1453, %v1472
    %v1478 = vadd.f32 %v1454, %v1474
    %v1479 = vmul.f32 %v1468, %v1129
    %v1480 = vmul.f32 %v1470, %v1135
    %v1481 = vmul.f32 %v1472, %v1141
    %v1482 = vmul.f32 %v1474, %v1147
    %v1483 = vadd.f32 %v1459, %v1479
    %v1484 = vadd.f32 %v1460, %v1480
    %v1485 = vadd.f32 %v1461, %v1481
    %v1486 = vadd.f32 %v1462, %v1482
    %v1487 = vsub.f32 %v1347, %v1387
    %v1488 = vsub.f32 %v1348, %v1388
    %v1489 = vsub.f32 %v1349, %v1389
    %v1490 = vsub.f32 %v1350, %v1390
    %v1491 = vmul.f32 %v1487, 1.442695
    %v1492 = vpow.pop %v1491
    %v1493 = vmul.f32 %v1488, 1.442695
    %v1494 = vpow.pop %v1493
    %v1495 = vmul.f32 %v1489, 1.442695
    %v1496 = vpow.pop %v1495
    %v1497 = vmul.f32 %v1490, 1.442695
    %v1498 = vpow.pop %v1497
    %v1499 = vadd.f32 %v1475, %v1492
    %v1500 = vadd.f32 %v1476, %v1494
    %v1501 = vadd.f32 %v1477, %v1496
    %v1502 = vadd.f32 %v1478, %v1498
    %v1503 = vmul.f32 %v1492, %v1216
    %v1504 = vmul.f32 %v1494, %v1222
    %v1505 = vmul.f32 %v1496, %v1228
    %v1506 = vmul.f32 %v1498, %v1234
    %v1507 = vadd.f32 %v1483, %v1503
    %v1508 = vadd.f32 %v1484, %v1504
    %v1509 = vadd.f32 %v1485, %v1505
    %v1510 = vadd.f32 %v1486, %v1506
    %v1511 = vsub.f32 %v1351, %v1387
    %v1512 = vsub.f32 %v1352, %v1388
    %v1513 = vsub.f32 %v1353, %v1389
    %v1514 = vsub.f32 %v1354, %v1390
    %v1515 = vmul.f32 %v1511, 1.442695
    %v1516 = vpow.pop %v1515
    %v1517 = vmul.f32 %v1512, 1.442695
    %v1518 = vpow.pop %v1517
    %v1519 = vmul.f32 %v1513, 1.442695
    %v1520 = vpow.pop %v1519
    %v1521 = vmul.f32 %v1514, 1.442695
    %v1522 = vpow.pop %v1521
    %v1523 = vadd.f32 %v1499, %v1516
    %v1524 = vadd.f32 %v1500, %v1518
    %v1525 = vadd.f32 %v1501, %v1520
    %v1526 = vadd.f32 %v1502, %v1522
    %v1527 = vmul.f32 %v1516, %v1218
    %v1528 = vmul.f32 %v1518, %v1224
    %v1529 = vmul.f32 %v1520, %v1230
    %v1530 = vmul.f32 %v1522, %v1236
    %v1531 = vadd.f32 %v1507, %v1527
    %v1532 = vadd.f32 %v1508, %v1528
    %v1533 = vadd.f32 %v1509, %v1529
    %v1534 = vadd.f32 %v1510, %v1530
    %v1535 = vsub.f32 %v1355, %v1387
    %v1536 = vsub.f32 %v1356, %v1388
    %v1537 = vsub.f32 %v1357, %v1389
    %v1538 = vsub.f32 %v1358, %v1390
    %v1539 = vmul.f32 %v1535, 1.442695
    %v1540 = vpow.pop %v1539
    %v1541 = vmul.f32 %v1536, 1.442695
    %v1542 = vpow.pop %v1541
    %v1543 = vmul.f32 %v1537, 1.442695
    %v1544 = vpow.pop %v1543
    %v1545 = vmul.f32 %v1538, 1.442695
    %v1546 = vpow.pop %v1545
    %v1547 = vadd.f32 %v1523, %v1540
    %v1548 = vadd.f32 %v1524, %v1542
    %v1549 = vadd.f32 %v1525, %v1544
    %v1550 = vadd.f32 %v1526, %v1546
    %v1551 = vmul.f32 %v1540, %v1305
    %v1552 = vmul.f32 %v1542, %v1311
    %v1553 = vmul.f32 %v1544, %v1317
    %v1554 = vmul.f32 %v1546, %v1323
    %v1555 = vadd.f32 %v1531, %v1551
    %v1556 = vadd.f32 %v1532, %v1552
    %v1557 = vadd.f32 %v1533, %v1553
    %v1558 = vadd.f32 %v1534, %v1554
    %v1559 = vsub.f32 %v1359, %v1387
    %v1560 = vsub.f32 %v1360, %v1388
    %v1561 = vsub.f32 %v1361, %v1389
    %v1562 = vsub.f32 %v1362, %v1390
    %v1563 = vmul.f32 %v1559, 1.442695
    %v1564 = vpow.pop %v1563
    %v1565 = vmul.f32 %v1560, 1.442695
    %v1566 = vpow.pop %v1565
    %v1567 = vmul.f32 %v1561, 1.442695
    %v1568 = vpow.pop %v1567
    %v1569 = vmul.f32 %v1562, 1.442695
    %v1570 = vpow.pop %v1569
    %v1571 = vadd.f32 %v1547, %v1564
    %v1572 = vadd.f32 %v1548, %v1566
    %v1573 = vadd.f32 %v1549, %v1568
    %v1574 = vadd.f32 %v1550, %v1570
    %v1575 = vmul.f32 %v1564, %v1307
    %v1576 = vmul.f32 %v1566, %v1313
    %v1577 = vmul.f32 %v1568, %v1319
    %v1578 = vmul.f32 %v1570, %v1325
    %v1579 = vadd.f32 %v1555, %v1575
    %v1580 = vadd.f32 %v1556, %v1576
    %v1581 = vadd.f32 %v1557, %v1577
    %v1582 = vadd.f32 %v1558, %v1578
    %v1583 = vrcp.pop %v1571
    %v1584 = vrcp.pop %v1572
    %v1585 = vrcp.pop %v1573
    %v1586 = vrcp.pop %v1574
    %v1587 = vmul.f32 %v1579, %v1583
    %v1588 = vmul.f32 %v1580, %v1584
    %v1589 = vmul.f32 %v1581, %v1585
    %v1590 = vmul.f32 %v1582, %v1586
    %v1591 = vld [vmem:[#allocation13] sm:$0xff]
    %v1592 = vld [vmem:[#allocation13 + $0x8] sm:$0xff]
    %v1593 = vld [vmem:[#allocation13 + $0x10] sm:$0xff]
    %v1594 = vld [vmem:[#allocation13 + $0x18] sm:$0xff]
    %v1595 = vld [vmem:[#allocation13 + $0x20] sm:$0xff]
    %v1596 = vld [vmem:[#allocation13 + $0x28] sm:$0xff]
    %v1597 = vld [vmem:[#allocation13 + $0x30] sm:$0xff]
    %v1598 = vld [vmem:[#allocation13 + $0x38] sm:$0xff]
    %v1599 = vld [vmem:[#allocation13 + $0x40] sm:$0xff]
    %v1600 = vld [vmem:[#allocation13 + $0x48] sm:$0xff]
    %v1601 = vld [vmem:[#allocation13 + $0x50] sm:$0xff]
    %v1602 = vld [vmem:[#allocation13 + $0x58] sm:$0xff]
    %v1603 = vld [vmem:[#allocation13 + $0x60] sm:$0xff]
    %v1604 = vld [vmem:[#allocation13 + $0x68] sm:$0xff]
    %v1605 = vld [vmem:[#allocation13 + $0x70] sm:$0xff]
    %v1606 = vld [vmem:[#allocation13 + $0x78] sm:$0xff]
    %v1607 = vld [vmem:[%s10] sm:$0x1]
    %v1609 = vlaneseq
    %v1610 = vshrl.u32 %v1609, 7
    %v1611 = vsub.s32 0, %v1610
    %v1612 = vrot.slane %v1607, %v1611
    %1614 = vmatprep.subr.mxu0 0.0
    %1615 = vmatpush1.xpose.msra.mxu0 %v1606
    %1616 = vmatprep.subr.mxu0 0.0
    %1617 = vmatpush1.xpose.msra.mxu0 %v1605
    %1618 = vmatprep.subr.mxu0 0.0
    %1619 = vmatpush1.xpose.msra.mxu0 %v1604
    %1620 = vmatprep.subr.mxu0 0.0
    %1621 = vmatpush1.xpose.msra.mxu0 %v1603
    %1622 = vmatprep.subr.mxu0 0.0
    %1623 = vmatpush1.xpose.msra.mxu0 %v1602
    %1624 = vmatprep.subr.mxu0 0.0
    %1625 = vmatpush1.xpose.msra.mxu0 %v1601
    %1626 = vmatprep.subr.mxu0 0.0
    %1627 = vmatpush1.xpose.msra.mxu0 %v1600
    %1628 = vmatprep.subr.mxu0 0.0
    %1629 = vmatpush1.xpose.msra.mxu0 %v1599
    %1630 = vmatprep.subr.mxu0 0.0
    %1631 = vmatpush1.xpose.msra.mxu0 %v1598
    %1632 = vmatprep.subr.mxu0 0.0
    %1633 = vmatpush1.xpose.msra.mxu0 %v1597
    %1634 = vmatprep.subr.mxu0 0.0
    %1635 = vmatpush1.xpose.msra.mxu0 %v1596
    %1636 = vmatprep.subr.mxu0 0.0
    %1637 = vmatpush1.xpose.msra.mxu0 %v1595
    %1638 = vmatprep.subr.mxu0 0.0
    %1639 = vmatpush1.xpose.msra.mxu0 %v1594
    %1640 = vmatprep.subr.mxu0 0.0
    %1641 = vmatpush1.xpose.msra.mxu0 %v1593
    %1642 = vmatprep.subr.mxu0 0.0
    %1643 = vmatpush1.xpose.msra.mxu0 %v1592
    %1644 = vmatprep.subr.mxu0 0.0
    %1645 = vmatpush1.xpose.msra.mxu0 %v1591
    %1646 = vmatprep.subr.mxu0 0.0
    %1647 = vmatpush2.xpose.msra.mxu0 0.0
    %1648 = vmatprep.subr.mxu0 0.0
    %1649 = vmatpush2.xpose.msra.mxu0 0.0
    %1650 = vmatprep.subr.mxu0 0.0
    %1651 = vmatpush2.xpose.msra.mxu0 0.0
    %1652 = vmatprep.subr.mxu0 0.0
    %1653 = vmatpush2.xpose.msra.mxu0 0.0
    %1654 = vmatprep.subr.mxu0 0.0
    %1655 = vmatpush2.xpose.msra.mxu0 0.0
    %1656 = vmatprep.subr.mxu0 0.0
    %1657 = vmatpush2.xpose.msra.mxu0 0.0
    %1658 = vmatprep.subr.mxu0 0.0
    %1659 = vmatpush2.xpose.msra.mxu0 0.0
    %1660 = vmatprep.subr.mxu0 0.0
    %1661 = vmatpush2.xpose.msra.mxu0 0.0
    %1662 = vmatprep.subr.mxu0 0.0
    %1663 = vmatpush2.xpose.msra.mxu0 0.0
    %1664 = vmatprep.subr.mxu0 0.0
    %1665 = vmatpush2.xpose.msra.mxu0 0.0
    %1666 = vmatprep.subr.mxu0 0.0
    %1667 = vmatpush2.xpose.msra.mxu0 0.0
    %1668 = vmatprep.subr.mxu0 0.0
    %1669 = vmatpush2.xpose.msra.mxu0 0.0
    %1670 = vmatprep.subr.mxu0 0.0
    %1671 = vmatpush2.xpose.msra.mxu0 0.0
    %1672 = vmatprep.subr.mxu0 0.0
    %1673 = vmatpush2.xpose.msra.mxu0 0.0
    %1674 = vmatprep.subr.mxu0 0.0
    %1675 = vmatpush2.xpose.msra.mxu0 0.0
    %1676 = vmatprep.subr.mxu0 0.0
    %1677 = vmatpush2.xpose.msra.mxu0 0.0
    %1678 = vmatprep.mubr.f32.mxu0 0.0
    %1679 = vmatmul.mubr.f32.gmra.mxu0 %v1587
    %v1680 = vpop.f32.mrf.mxu0
    %v1681 = vadd.f32 %v1612, %v1680
    %v1682 = vpop.f32.mrf.mxu0
    %1683 = vmatprep.mubr.f32.mxu0 0.0
    %1684 = vmatmul.mubr.f32.gmra.mxu0 %v1588
    %v1685 = vpop.f32.mrf.mxu0
    %v1686 = vadd.f32 %v1612, %v1685
    %v1687 = vpop.f32.mrf.mxu0
    %1688 = vmatprep.mubr.f32.mxu0 0.0
    %1689 = vmatmul.mubr.f32.gmra.mxu0 %v1589
    %v1690 = vpop.f32.mrf.mxu0
    %v1691 = vadd.f32 %v1612, %v1690
    %v1692 = vpop.f32.mrf.mxu0
    %1693 = vmatprep.mubr.f32.mxu0 0.0
    %1694 = vmatmul.mubr.f32.gmra.mxu0 %v1590
    %v1695 = vpop.f32.mrf.mxu0
    %v1696 = vadd.f32 %v1612, %v1695
    %v1697 = vpop.f32.mrf.mxu0
    %1698 = vdwg.mxu0
    %1699 = vst [vmem:[#allocation16] sm:$0xff] %v1681
    %1700 = vst [vmem:[#allocation16 + $0x8] sm:$0xff] %v1686
    %1701 = vst [vmem:[#allocation16 + $0x10] sm:$0xff] %v1691
    %1702 = vst [vmem:[#allocation16 + $0x18] sm:$0xff] %v1696
    // Predicated region
    $region82: #{tpu_custom_call.1} parent=1 // pred_check
      _
    $region83: #{tpu_custom_call.1} parent=1 // pred_check_branch
      %1704 = sbr.rel (0) target = $region85
    $region84: #{tpu_custom_call.1} parent=1 // pred_region
      %s1706 = ssub.s32 512, 512
      %1707 = vsyncadd [#allocation4], %s1706
      %s1708 = sshll.u32 [#allocation16], 4
      %s1709 = int_to_ptr.vmem [resolvable:$true] %s1708
      %1714 = dma.vmem_to_hbm [thread:$0]  %s1709, 512, %s12, [#allocation4], 128, 128, 8
    $region85: #{tpu_custom_call.1} parent=1 // pred_fallthru
      _
    // Predicated region
    $region86: #{tpu_custom_call.1} parent=1 // pred_check
      _
    $region87: #{tpu_custom_call.1} parent=1 // pred_check_branch
      %1716 = sbr.rel (0) target = $region89
    $region88: #{tpu_custom_call.1} parent=1 // pred_region
      %1717 = dma.done [#allocation4], 512
    $region89: #{tpu_custom_call.1} parent=1 // pred_fallthru
      _
    %1718 = vsyncpa [#allocation3], 1
    %1719 = vsyncpa [#allocation6], 1
    %1720 = vsyncpa [#allocation9], 1
    %1721 = vsyncpa [#allocation12], 1
    %1722 = vsyncpa [#allocation15], 1
    %1723 = vsyncpa [#allocation4], 1

</llo_original>
